<compile_context>
chip_gen: v5e
topology: v5e:2x2
jax: 0.10.0
libtpu: 0.0.40
codegen_flags: <defaults>
</compile_context>

<pallas_src>
import functools

import jax
import jax.numpy as jnp
import numpy as np
from jax.experimental import pallas as pl
from jax.experimental.pallas import tpu as pltpu


def _round_up(n, m):
    return ((n + m - 1) // m) * m


def _dot_f32(a, b):
    # Full-f32-accuracy MXU matmul.  Only used for the tiny one-row DFT/iDFT
    # matmuls (per-step prologue / one-shot finalize), so the extra emulation
    # passes are negligible.
    return jnp.dot(a, b, preferred_element_type=jnp.float32,
                   precision=jax.lax.Precision.HIGHEST)


def _idt_meas_kernel(x_ref, w_ref, h_ref, y_ref, part_ref, *, s2, nb):
    """One measurement block (nb rows): y = Ph * a ; partial ftran sums."""
    # Ph = FFT2(x) via ONE fused Kronecker-DFT matmul: x_flat @ [Wr | Wi].
    # Recomputed per step (a ~(1,256)x(256,512) matmul, negligible) so there
    # is no carried state and the grid axis can be "parallel".
    ph = _dot_f32(x_ref[...], w_ref[...])                    # (1, 2*S2)
    phr = ph[:, :s2]
    phi = ph[:, s2:]

    # Single packed H stream per step: [ar | ai | hcr | hci], precomputed in
    # the wrapper (Hermitian symmetrization and nan_to_num hoisted out of the
    # hot loop).
    ar = h_ref[:, 0 * s2:1 * s2]
    ai = h_ref[:, 1 * s2:2 * s2]
    hcr = h_ref[:, 2 * s2:3 * s2]
    hci = h_ref[:, 3 * s2:4 * s2]

    # fmult + iFFT2 -> Re -> FFT2 collapsed to element-wise work:
    #   y_n = FFT2(Re(iFFT2(H_n * Ph))) == Ph * (H_n + conj(H_n[rev])) / 2
    # TODO(synk): this identity elides nan_to_num(intensityPred); it matches
    # the PyTorch forward only when x and Hreal_temp are finite.
    yr = phr * ar - phi * ai
    yi = phr * ai + phi * ar
    y_ref[:, :s2] = yr
    y_ref[:, s2:] = yi

    # ftran('Ph') partial: sum_n conj(nan_to_num(H_n)) * y_n for this block,
    # folded only to 8 sublanes here (fully collapsed in the finalize kernel).
    pr = hcr * yr - hci * yi
    pi = hcr * yi + hci * yr
    part_ref[:, :s2] = jnp.sum(pr.reshape(nb // 8, 8, s2), axis=0)
    part_ref[:, s2:] = jnp.sum(pi.reshape(nb // 8, 8, s2), axis=0)


def _idt_finalize_kernel(part_ref, w_ref, out_ref, *, scale):
    """Collapse partials, ipt = Re(iFFT2(acc)) / (S^2*N), min/max normalize."""
    acc = jnp.sum(part_ref[...], axis=0, keepdims=True)       # (1, 2*S2) = [Xr|Xi]
    # Re(iFFT2(X)) = (Xr @ Wr + Xi @ Wi) / S^2 as ONE matmul against
    # vstack([Wr, Wi]); `scale` also folds ftran's 1/NBF_KEEP.
    ipt = _dot_f32(acc, w_ref[...]) * scale                   # (1, S2)
    mx = jnp.max(ipt)
    mn = jnp.min(ipt)
    out_ref[...] = 2.0 * ((ipt - mn) / (mx - mn + 1e-8)) - 1.0


def idt_forward(x, hreal_temp, max_nb=256):
    """IDTClass.forward (add_noise=False).

    x:          (1, 1, S, S)    float32 phase image
    hreal_temp: (N, 1, S, S, 2) float32 complex transfer functions
    returns (y_each (N,1,S,S,2), ipt_each_real_normalized (1,1,S,S))
    """
    assert x.shape[0] == 1 and x.shape[1] == 1
    assert hreal_temp.shape[1] == 1
    n_meas = hreal_temp.shape[0]
    S = x.shape[-1]
    assert x.shape[-2] == S, "tensor_normlize requires square images"
    # Kronecker-DFT formulation keeps an (S^2, 2*S^2) matrix resident in VMEM.
    # TODO(synk): for S > 32 switch to per-axis DFT matmuls (W would not fit).
    assert S <= 32, "flattened Kronecker DFT path is sized for S <= 32"
    S2 = S * S

    x_flat = x[0, 0].astype(jnp.float32).reshape(1, S2)

    hr = hreal_temp[:, 0, :, :, 0].astype(jnp.float32)         # (N, S, S)
    hi = hreal_temp[:, 0, :, :, 1].astype(jnp.float32)
    # Exact index reversal a[n, j, k] -> a[n, (-j) % S, (-k) % S].
    rev = lambda a: jnp.roll(jnp.flip(a, axis=(-2, -1)), shift=(1, 1), axis=(-2, -1))
    # Hot-loop streams precomputed once (constant w.r.t. x; callers with a
    # static Hreal_temp can hoist this whole prep out of the forward path):
    ar = (hr + rev(hr)) * 0.5
    ai = (hi - rev(hi)) * 0.5
    hcr = jnp.nan_to_num(hr, nan=0.0)
    hci = jnp.nan_to_num(-hi, nan=0.0)                          # conj, as in ftran

    # Measurement rows per grid step: as large as possible (amortizes the
    # ~0.35us per-step cost), multiple of 8, capped at 256 for v7x VMEM.
    nb = min(_round_up(n_meas, 8), _round_up(max_nb, 8))
    n_pad = _round_up(n_meas, nb)
    n_steps = n_pad // nb

    def _prep(a):
        a = a.reshape(n_meas, S2)
        if n_pad != n_meas:
            a = jnp.pad(a, ((0, n_pad - n_meas), (0, 0)))       # zero rows -> zero contribution
        return a

    # One packed, lane-dense input stream per step: (nb, 4*S2).
    h_pack = jnp.concatenate([_prep(ar), _prep(ai), _prep(hcr), _prep(hci)], axis=1)

    # Kronecker 2-D DFT matrix W = F (x) F with F[j,k] = exp(-2*pi*i*j*k/S);
    # FFT2 of a row-major-flattened row p is p @ W (W symmetric).
    k = np.arange(S)
    F = np.exp(-2j * np.pi * np.outer(k, k) / S)
    W = np.kron(F, F)                                           # (S2, S2)
    Wr = np.real(W).astype(np.float32)
    Wi = np.imag(W).astype(np.float32)
    w_cat = jnp.asarray(np.concatenate([Wr, Wi], axis=1))       # (S2, 2*S2): fused FFT2
    w_stack = jnp.asarray(np.concatenate([Wr, Wi], axis=0))     # (2*S2, S2): fused Re(iFFT2)

    scale = 1.0 / (float(S2) * float(n_meas))                   # iFFT 1/S^2 and ftran 1/N

    grid_spec = pltpu.PrefetchScalarGridSpec(
        num_scalar_prefetch=0,
        grid=(n_steps,),
        in_specs=[
            # x and W have constant block indices -> fetched once and kept
            # resident by the pipeline.
            pl.BlockSpec((1, S2), lambda g: (0, 0)),             # x (resident)
            pl.BlockSpec((S2, 2 * S2), lambda g: (0, 0)),        # [Wr | Wi] (resident)
            pl.BlockSpec((nb, 4 * S2), lambda g: (g, 0)),        # packed H block
        ],
        out_specs=[
            pl.BlockSpec((nb, 2 * S2), lambda g: (g, 0)),        # packed [yr | yi] block
            pl.BlockSpec((8, 2 * S2), lambda g: (g, 0)),         # per-step partial sums
        ],
    )

    y_pack, partials = pl.pallas_call(
        functools.partial(_idt_meas_kernel, s2=S2, nb=nb),
        grid_spec=grid_spec,
        out_shape=(
            jax.ShapeDtypeStruct((n_pad, 2 * S2), jnp.float32),
            jax.ShapeDtypeStruct((n_steps * 8, 2 * S2), jnp.float32),
        ),
        compiler_params=pltpu.CompilerParams(
            # No carried state -> measurement axis is truly parallel (both
            # TensorCores on v7x; harmless on single-TC v5e/v6e).
            dimension_semantics=("parallel",),
            # nb=256 needs ~8 MiB; 48 MiB stays under v7x's 64 MiB physical
            # while leaving headroom for larger max_nb on v5e/v6e.
            vmem_limit_bytes=48 * 1024 * 1024,
        ),
    )(x_flat, w_cat, h_pack)

    # Tiny one-shot finalize: collapse partials, fused real-iDFT, normalize.
    norm = pl.pallas_call(
        functools.partial(_idt_finalize_kernel, scale=scale),
        out_shape=jax.ShapeDtypeStruct((1, S2), jnp.float32),
    )(partials, w_stack)

    yr_out = y_pack[:n_meas, :S2].reshape(n_meas, 1, S, S)
    yi_out = y_pack[:n_meas, S2:].reshape(n_meas, 1, S, S)
    y_each = jnp.stack([yr_out, yi_out], axis=-1)               # (N, 1, S, S, 2)
    ipt_norm = norm.reshape(1, 1, S, S)                          # (1, 1, S, S)
    return y_each, ipt_norm


def _reference_forward(x, hreal_temp):
    """Pure-JAX (jnp.fft) reference mirroring IDTClass.forward, add_noise=False."""
    n_meas = hreal_temp.shape[0]
    Hc = hreal_temp[..., 0] + 1j * hreal_temp[..., 1]            # (N,1,S,S)
    Ph = jnp.fft.fft2(x.astype(jnp.complex64), axes=(-2, -1))    # (1,1,S,S)
    Z = Hc * Ph                                                  # fmult
    inten = jnp.real(jnp.fft.ifft2(Z, axes=(-2, -1)))
    inten = jnp.nan_to_num(inten, nan=0.0)
    y = jnp.fft.fft2(inten.astype(jnp.complex64), axes=(-2, -1))
    # ftran 'Ph': conj(H) with nan_to_num on real/imag parts (as in PyTorch).
    hc = (jnp.nan_to_num(jnp.real(Hc), nan=0.0)
          + 1j * jnp.nan_to_num(-jnp.imag(Hc), nan=0.0))
    X = jnp.sum(hc * y, axis=0) / n_meas
    ipt = jnp.real(jnp.fft.ifft2(X, axes=(-2, -1)))[None]        # (1,1,S,S)
    mx = jnp.max(ipt, axis=(-2, -1), keepdims=True)
    mn = jnp.min(ipt, axis=(-2, -1), keepdims=True)
    norm = 2.0 * ((ipt - mn) / (mx - mn + 1e-8)) - 1.0
    y_each = jnp.stack([jnp.real(y), jnp.imag(y)], axis=-1)      # (N,1,S,S,2)
    return y_each, norm


if __name__ == "__main__":
    key = jax.random.PRNGKey(0)
    k_x, k_h = jax.random.split(key)

    N_MEAS, S = 20, 16  # small synthetic stand-ins for NBF_KEEP and IMG_Patch
    x = jax.random.normal(k_x, (1, 1, S, S), dtype=jnp.float32)
    # Deterministic synthetic Hreal_temp (normally loaded from a .mat file).
    hreal_temp = jax.random.normal(k_h, (N_MEAS, 1, S, S, 2), dtype=jnp.float32)

    y_ref, norm_ref = _reference_forward(x, hreal_temp)

    # Default (single grid step) and forced multi-step (max_nb=8 -> 3 steps),
    # exercising the parallel measurement axis and the partial-sum finalize.
    for mnb in (256, 8):
        y_each, ipt_norm = idt_forward(x, hreal_temp, max_nb=mnb)
        jax.block_until_ready((y_each, ipt_norm))
        assert y_each.shape == (N_MEAS, 1, S, S, 2)
        assert ipt_norm.shape == (1, 1, S, S)
        assert np.allclose(np.asarray(y_each), np.asarray(y_ref), rtol=1e-2, atol=1e-2)
        assert np.allclose(np.asarray(ipt_norm), np.asarray(norm_ref), rtol=1e-2, atol=1e-2)

    print("KERNEL_OK")
</pallas_src>

<mosaic_0001>
module attributes {stable_mosaic.version = 11 : i64} {
  func.func @_idt_meas_kernel(%arg0: i32, %arg1: memref<1x256xf32, #tpu.memory_space<vmem>>, %arg2: memref<256x512xf32, #tpu.memory_space<vmem>>, %arg3: memref<24x1024xf32, #tpu.memory_space<vmem>>, %arg4: memref<24x512xf32, #tpu.memory_space<vmem>>, %arg5: memref<8x512xf32, #tpu.memory_space<vmem>>) attributes {dimension_semantics = [#tpu.dimension_semantics<parallel>], iteration_bounds = array<i64: 1>, scalar_prefetch = 0 : i64, scratch_operands = 0 : i64, tpu.core_type = #tpu.core_type<tc>, window_params = [{pipeline_mode = #tpu.pipeline_mode<synchronous>, transform_indices = @transform_0, window_bounds = array<i64: 1, 256>}, {pipeline_mode = #tpu.pipeline_mode<synchronous>, transform_indices = @transform_1, window_bounds = array<i64: 256, 512>}, {transform_indices = @transform_2, window_bounds = array<i64: 24, 1024>}, {transform_indices = @transform_3, window_bounds = array<i64: 24, 512>}, {transform_indices = @transform_4, window_bounds = array<i64: 8, 512>}]} {
    %c0 = arith.constant 0 : index
    %c0_0 = arith.constant 0 : index
    %0 = vector.load %arg1[%c0, %c0_0] : memref<1x256xf32, #tpu.memory_space<vmem>>, vector<1x256xf32>
    %c0_1 = arith.constant 0 : index
    %c0_2 = arith.constant 0 : index
    %1 = vector.load %arg2[%c0_1, %c0_2] : memref<256x512xf32, #tpu.memory_space<vmem>>, vector<256x512xf32>
    %cst = arith.constant dense<0.000000e+00> : vector<1x512xf32>
    %2 = tpu.matmul %0, %1, %cst {dimension_numbers = #tpu.dot_dimension_numbers<[1], [0], [0], [1], [0, 0, 1, 1], [], []>, precision = #tpu.contract_precision<fp32>} : vector<1x256xf32>, vector<256x512xf32>, vector<1x512xf32> -> vector<1x512xf32>
    %3 = vector.extract_strided_slice %2 {offsets = [0, 0], sizes = [1, 256], strides = [1, 1]} : vector<1x512xf32> to vector<1x256xf32>
    %4 = vector.extract_strided_slice %2 {offsets = [0, 256], sizes = [1, 256], strides = [1, 1]} : vector<1x512xf32> to vector<1x256xf32>
    %c0_3 = arith.constant 0 : index
    %c0_4 = arith.constant 0 : index
    %5 = vector.load %arg3[%c0_3, %c0_4] : memref<24x1024xf32, #tpu.memory_space<vmem>>, vector<24x256xf32>
    %c0_5 = arith.constant 0 : index
    %c256 = arith.constant 256 : index
    %6 = vector.load %arg3[%c0_5, %c256] : memref<24x1024xf32, #tpu.memory_space<vmem>>, vector<24x256xf32>
    %c0_6 = arith.constant 0 : index
    %c512 = arith.constant 512 : index
    %7 = vector.load %arg3[%c0_6, %c512] : memref<24x1024xf32, #tpu.memory_space<vmem>>, vector<24x256xf32>
    %c0_7 = arith.constant 0 : index
    %c768 = arith.constant 768 : index
    %8 = vector.load %arg3[%c0_7, %c768] : memref<24x1024xf32, #tpu.memory_space<vmem>>, vector<24x256xf32>
    %9 = vector.broadcast %3 : vector<1x256xf32> to vector<24x256xf32>
    %10 = arith.mulf %9, %5 : vector<24x256xf32>
    %11 = vector.broadcast %4 : vector<1x256xf32> to vector<24x256xf32>
    %12 = arith.mulf %11, %6 : vector<24x256xf32>
    %13 = arith.subf %10, %12 : vector<24x256xf32>
    %14 = vector.broadcast %3 : vector<1x256xf32> to vector<24x256xf32>
    %15 = arith.mulf %14, %6 : vector<24x256xf32>
    %16 = vector.broadcast %4 : vector<1x256xf32> to vector<24x256xf32>
    %17 = arith.mulf %16, %5 : vector<24x256xf32>
    %18 = arith.addf %15, %17 : vector<24x256xf32>
    %c0_8 = arith.constant 0 : index
    %c0_9 = arith.constant 0 : index
    %19 = vector.load %arg4[%c0_8, %c0_9] : memref<24x512xf32, #tpu.memory_space<vmem>>, vector<24x256xf32>
    tpu.vector_store %arg4[%c0_8, %c0_9], %13 {strides = array<i32>} : memref<24x512xf32, #tpu.memory_space<vmem>>, vector<24x256xf32>,
    %c0_10 = arith.constant 0 : index
    %c256_11 = arith.constant 256 : index
    %20 = vector.load %arg4[%c0_10, %c256_11] : memref<24x512xf32, #tpu.memory_space<vmem>>, vector<24x256xf32>
    tpu.vector_store %arg4[%c0_10, %c256_11], %18 {strides = array<i32>} : memref<24x512xf32, #tpu.memory_space<vmem>>, vector<24x256xf32>,
    %21 = arith.mulf %7, %13 : vector<24x256xf32>
    %22 = arith.mulf %8, %18 : vector<24x256xf32>
    %23 = arith.subf %21, %22 : vector<24x256xf32>
    %24 = arith.mulf %7, %18 : vector<24x256xf32>
    %25 = arith.mulf %8, %13 : vector<24x256xf32>
    %26 = arith.addf %24, %25 : vector<24x256xf32>
    %27 = vector.shape_cast %23 : vector<24x256xf32> to vector<3x8x256xf32>
    %cst_12 = arith.constant dense<0.000000e+00> : vector<8x256xf32>
    %28 = vector.multi_reduction <add>, %27, %cst_12 [0] : vector<3x8x256xf32> to vector<8x256xf32>
    %c0_13 = arith.constant 0 : index
    %c0_14 = arith.constant 0 : index
    %29 = vector.load %arg5[%c0_13, %c0_14] : memref<8x512xf32, #tpu.memory_space<vmem>>, vector<8x256xf32>
    tpu.vector_store %arg5[%c0_13, %c0_14], %28 {strides = array<i32>} : memref<8x512xf32, #tpu.memory_space<vmem>>, vector<8x256xf32>,
    %30 = vector.shape_cast %26 : vector<24x256xf32> to vector<3x8x256xf32>
    %cst_15 = arith.constant dense<0.000000e+00> : vector<8x256xf32>
    %31 = vector.multi_reduction <add>, %30, %cst_15 [0] : vector<3x8x256xf32> to vector<8x256xf32>
    %c0_16 = arith.constant 0 : index
    %c256_17 = arith.constant 256 : index
    %32 = vector.load %arg5[%c0_16, %c256_17] : memref<8x512xf32, #tpu.memory_space<vmem>>, vector<8x256xf32>
    tpu.vector_store %arg5[%c0_16, %c256_17], %31 {strides = array<i32>} : memref<8x512xf32, #tpu.memory_space<vmem>>, vector<8x256xf32>,
    return
  }
  func.func @transform_0(%arg0: i32) -> (i32, i32) {
    %c0_i32 = arith.constant 0 : i32
    %c0_i32_0 = arith.constant 0 : i32
    %c0_i32_1 = arith.constant 0 : i32
    return %c0_i32, %c0_i32_0 : i32, i32
  }
  func.func @transform_1(%arg0: i32) -> (i32, i32) {
    %c0_i32 = arith.constant 0 : i32
    %c0_i32_0 = arith.constant 0 : i32
    %c0_i32_1 = arith.constant 0 : i32
    return %c0_i32, %c0_i32_0 : i32, i32
  }
  func.func @transform_2(%arg0: i32) -> (i32, i32) {
    %c0_i32 = arith.constant 0 : i32
    %c0_i32_0 = arith.constant 0 : i32
    return %arg0, %c0_i32 : i32, i32
  }
  func.func @transform_3(%arg0: i32) -> (i32, i32) {
    %c0_i32 = arith.constant 0 : i32
    %c0_i32_0 = arith.constant 0 : i32
    return %arg0, %c0_i32 : i32, i32
  }
  func.func @transform_4(%arg0: i32) -> (i32, i32) {
    %c0_i32 = arith.constant 0 : i32
    %c0_i32_0 = arith.constant 0 : i32
    return %arg0, %c0_i32 : i32, i32
  }
}

</mosaic_0001>

<llo_original>
// kernel: tpu_custom_call.1
$region0: #{tpu_custom_call.1}
  #allocation0 [shape = 'u32[]', space=smem, size = 0x4, offset = 0x4, fixed_abs, tag = 'smem constant byte address 0x4 - core index']
  #allocation1 [shape = 'u32[72,128]{1,0:T(1,128)}', space=vmem, size = 0x9000, scoped, tag = 'internal scratch']
  %s0 = inlined_call_operand.hbm [shape: f32[1,256], index: 0, kind: input, shape index: {}]
  %s1 = inlined_call_operand.hbm [shape: f32[256,512], index: 1, kind: input, shape index: {}]
  %s2 = inlined_call_operand.hbm [shape: f32[24,1024], index: 2, kind: input, shape index: {}]
  %s3 = inlined_call_operand.hbm [shape: f32[24,512], index: 3, kind: output, shape index: {0}]
  %s4 = inlined_call_operand.hbm [shape: f32[8,512], index: 4, kind: output, shape index: {1}]
  %5 = xla_tuple %s3, %s4
  %s6 = sld [smem:[#allocation0]]
  $region42: #{tpu_custom_call.1} parent=0
    _
  %s8 = ssub.s32 1, %s6
  %s9 = scalar_select 0, %s8, %s6
  $region1: #{tpu_custom_call.1} parent=0
    #allocation2 [shape = 'u8[1024]{0}', space=vmem, size = 0x400, scoped, tag = 'input window, operand 0, single buffered']
    #allocation3 [shape = 's32[1]{0}', space=sflag, size = 0x4, scoped, tag = 'scoped memory for tpu_custom_call.1']
    #allocation4 [shape = 's32[1]{0}', space=sflag, size = 0x4, scoped, tag = 'scoped memory for tpu_custom_call.1']
    #allocation5 [shape = 'u8[524288]{0}', space=vmem, size = 0x80000, scoped, tag = 'input window, operand 1, single buffered']
    #allocation6 [shape = 's32[1]{0}', space=sflag, size = 0x4, scoped, tag = 'scoped memory for tpu_custom_call.1']
    #allocation7 [shape = 'u8[98304]{0}', space=vmem, size = 0x18000, scoped, tag = 'input window, operand 2, single buffered']
    #allocation8 [shape = 'u8[49152]{0}', space=vmem, size = 0xc000, scoped, tag = 'output window, operand 0, single buffered']
    #allocation9 [shape = 'u8[16384]{0}', space=vmem, size = 0x4000, scoped, tag = 'output window, operand 1, single buffered']
    #allocation10 [shape = 's32[1]{0}', space=sflag, size = 0x4, scoped, tag = 'scoped memory for tpu_custom_call.1']
    %10 = vsyncpa [#allocation3], 0
    %11 = vsyncpa [#allocation6], 0
    %12 = vsyncpa [#allocation4], 0
    %13 = vsyncpa [#allocation10], 0
    // Predicated region
    $region2: #{tpu_custom_call.1} parent=1 // pred_check
      _
    $region3: #{tpu_custom_call.1} parent=1 // pred_check_branch
      %15 = sbr.rel (0) target = $region5
    $region4: #{tpu_custom_call.1} parent=1 // pred_region
      %17 = vsyncadd [#allocation3], 0
      %s19 = sshll.u32 %s0, 4
      %s20 = int_to_ptr.hbm [resolvable:$true] %s19
      %s21 = sshll.u32 [#allocation2], 4
      %s22 = int_to_ptr.vmem [resolvable:$true] %s21
      %24 = dma.hbm_to_vmem [thread:$0]  %s20, 32, %s22, [#allocation3]
    $region5: #{tpu_custom_call.1} parent=1 // pred_fallthru
      _
    // Predicated region
    $region6: #{tpu_custom_call.1} parent=1 // pred_check
      _
    $region7: #{tpu_custom_call.1} parent=1 // pred_check_branch
      %26 = sbr.rel (0) target = $region9
    $region8: #{tpu_custom_call.1} parent=1 // pred_region
      %28 = vsyncadd [#allocation6], 0
      %s29 = sshll.u32 %s1, 4
      %s30 = int_to_ptr.hbm [resolvable:$true] %s29
      %s31 = sshll.u32 [#allocation5], 4
      %s32 = int_to_ptr.vmem [resolvable:$true] %s31
      %37 = dma.hbm_to_vmem [thread:$0]  %s30, 16384, %s32, [#allocation6], 512, 512, 32
    $region9: #{tpu_custom_call.1} parent=1 // pred_fallthru
      _
    // Predicated region
    $region10: #{tpu_custom_call.1} parent=1 // pred_check
      _
    $region11: #{tpu_custom_call.1} parent=1 // pred_check_branch
      %39 = sbr.rel (0) target = $region13
    $region12: #{tpu_custom_call.1} parent=1 // pred_region
      %41 = vsyncadd [#allocation6], 0
      %s42 = sshll.u32 %s2, 4
      %s43 = int_to_ptr.hbm [resolvable:$true] %s42
      %s44 = sshll.u32 [#allocation7], 4
      %s45 = int_to_ptr.vmem [resolvable:$true] %s44
      %50 = dma.hbm_to_vmem [thread:$0]  %s43, 3072, %s45, [#allocation6], 1024, 1024, 64
    $region13: #{tpu_custom_call.1} parent=1 // pred_fallthru
      _
    // Predicated region
    $region14: #{tpu_custom_call.1} parent=1 // pred_check
      _
    $region15: #{tpu_custom_call.1} parent=1 // pred_check_branch
      %52 = sbr.rel (0) target = $region17
    $region16: #{tpu_custom_call.1} parent=1 // pred_region
      %54 = dma.done [#allocation3], 32
    $region17: #{tpu_custom_call.1} parent=1 // pred_fallthru
      _
    // Predicated region
    $region18: #{tpu_custom_call.1} parent=1 // pred_check
      _
    $region19: #{tpu_custom_call.1} parent=1 // pred_check_branch
      %56 = sbr.rel (0) target = $region21
    $region20: #{tpu_custom_call.1} parent=1 // pred_region
      %58 = dma.done [#allocation6], 16384
    $region21: #{tpu_custom_call.1} parent=1 // pred_fallthru
      _
    // Predicated region
    $region22: #{tpu_custom_call.1} parent=1 // pred_check
      _
    $region23: #{tpu_custom_call.1} parent=1 // pred_check_branch
      %60 = sbr.rel (0) target = $region25
    $region24: #{tpu_custom_call.1} parent=1 // pred_region
      %62 = dma.done [#allocation6], 3072
    $region25: #{tpu_custom_call.1} parent=1 // pred_fallthru
      _
    %v63 = vld [vmem:[#allocation2] sm:$0x3]
    %v64 = vld [vmem:[#allocation5] sm:$0xff]
    %v65 = vld [vmem:[#allocation5 + $0x8] sm:$0xff]
    %v66 = vld [vmem:[#allocation5 + $0x10] sm:$0xff]
    %v67 = vld [vmem:[#allocation5 + $0x18] sm:$0xff]
    %v68 = vld [vmem:[#allocation5 + $0x20] sm:$0xff]
    %v69 = vld [vmem:[#allocation5 + $0x28] sm:$0xff]
    %v70 = vld [vmem:[#allocation5 + $0x30] sm:$0xff]
    %v71 = vld [vmem:[#allocation5 + $0x38] sm:$0xff]
    %v72 = vld [vmem:[#allocation5 + $0x40] sm:$0xff]
    %v73 = vld [vmem:[#allocation5 + $0x48] sm:$0xff]
    %v74 = vld [vmem:[#allocation5 + $0x50] sm:$0xff]
    %v75 = vld [vmem:[#allocation5 + $0x58] sm:$0xff]
    %v76 = vld [vmem:[#allocation5 + $0x60] sm:$0xff]
    %v77 = vld [vmem:[#allocation5 + $0x68] sm:$0xff]
    %v78 = vld [vmem:[#allocation5 + $0x70] sm:$0xff]
    %v79 = vld [vmem:[#allocation5 + $0x78] sm:$0xff]
    %v80 = vld [vmem:[#allocation5 + $0x80] sm:$0xff]
    %v81 = vld [vmem:[#allocation5 + $0x88] sm:$0xff]
    %v82 = vld [vmem:[#allocation5 + $0x90] sm:$0xff]
    %v83 = vld [vmem:[#allocation5 + $0x98] sm:$0xff]
    %v84 = vld [vmem:[#allocation5 + $0xa0] sm:$0xff]
    %v85 = vld [vmem:[#allocation5 + $0xa8] sm:$0xff]
    %v86 = vld [vmem:[#allocation5 + $0xb0] sm:$0xff]
    %v87 = vld [vmem:[#allocation5 + $0xb8] sm:$0xff]
    %v88 = vld [vmem:[#allocation5 + $0xc0] sm:$0xff]
    %v89 = vld [vmem:[#allocation5 + $0xc8] sm:$0xff]
    %v90 = vld [vmem:[#allocation5 + $0xd0] sm:$0xff]
    %v91 = vld [vmem:[#allocation5 + $0xd8] sm:$0xff]
    %v92 = vld [vmem:[#allocation5 + $0xe0] sm:$0xff]
    %v93 = vld [vmem:[#allocation5 + $0xe8] sm:$0xff]
    %v94 = vld [vmem:[#allocation5 + $0xf0] sm:$0xff]
    %v95 = vld [vmem:[#allocation5 + $0xf8] sm:$0xff]
    %v96 = vld [vmem:[#allocation5 + $0x100] sm:$0xff]
    %v97 = vld [vmem:[#allocation5 + $0x108] sm:$0xff]
    %v98 = vld [vmem:[#allocation5 + $0x110] sm:$0xff]
    %v99 = vld [vmem:[#allocation5 + $0x118] sm:$0xff]
    %v100 = vld [vmem:[#allocation5 + $0x120] sm:$0xff]
    %v101 = vld [vmem:[#allocation5 + $0x128] sm:$0xff]
    %v102 = vld [vmem:[#allocation5 + $0x130] sm:$0xff]
    %v103 = vld [vmem:[#allocation5 + $0x138] sm:$0xff]
    %v104 = vld [vmem:[#allocation5 + $0x140] sm:$0xff]
    %v105 = vld [vmem:[#allocation5 + $0x148] sm:$0xff]
    %v106 = vld [vmem:[#allocation5 + $0x150] sm:$0xff]
    %v107 = vld [vmem:[#allocation5 + $0x158] sm:$0xff]
    %v108 = vld [vmem:[#allocation5 + $0x160] sm:$0xff]
    %v109 = vld [vmem:[#allocation5 + $0x168] sm:$0xff]
    %v110 = vld [vmem:[#allocation5 + $0x170] sm:$0xff]
    %v111 = vld [vmem:[#allocation5 + $0x178] sm:$0xff]
    %v112 = vld [vmem:[#allocation5 + $0x180] sm:$0xff]
    %v113 = vld [vmem:[#allocation5 + $0x188] sm:$0xff]
    %v114 = vld [vmem:[#allocation5 + $0x190] sm:$0xff]
    %v115 = vld [vmem:[#allocation5 + $0x198] sm:$0xff]
    %v116 = vld [vmem:[#allocation5 + $0x1a0] sm:$0xff]
    %v117 = vld [vmem:[#allocation5 + $0x1a8] sm:$0xff]
    %v118 = vld [vmem:[#allocation5 + $0x1b0] sm:$0xff]
    %v119 = vld [vmem:[#allocation5 + $0x1b8] sm:$0xff]
    %v120 = vld [vmem:[#allocation5 + $0x1c0] sm:$0xff]
    %v121 = vld [vmem:[#allocation5 + $0x1c8] sm:$0xff]
    %v122 = vld [vmem:[#allocation5 + $0x1d0] sm:$0xff]
    %v123 = vld [vmem:[#allocation5 + $0x1d8] sm:$0xff]
    %v124 = vld [vmem:[#allocation5 + $0x1e0] sm:$0xff]
    %v125 = vld [vmem:[#allocation5 + $0x1e8] sm:$0xff]
    %v126 = vld [vmem:[#allocation5 + $0x1f0] sm:$0xff]
    %v127 = vld [vmem:[#allocation5 + $0x1f8] sm:$0xff]
    %v128 = vld [vmem:[#allocation5 + $0x200] sm:$0xff]
    %v129 = vld [vmem:[#allocation5 + $0x208] sm:$0xff]
    %v130 = vld [vmem:[#allocation5 + $0x210] sm:$0xff]
    %v131 = vld [vmem:[#allocation5 + $0x218] sm:$0xff]
    %v132 = vld [vmem:[#allocation5 + $0x220] sm:$0xff]
    %v133 = vld [vmem:[#allocation5 + $0x228] sm:$0xff]
    %v134 = vld [vmem:[#allocation5 + $0x230] sm:$0xff]
    %v135 = vld [vmem:[#allocation5 + $0x238] sm:$0xff]
    %v136 = vld [vmem:[#allocation5 + $0x240] sm:$0xff]
    %v137 = vld [vmem:[#allocation5 + $0x248] sm:$0xff]
    %v138 = vld [vmem:[#allocation5 + $0x250] sm:$0xff]
    %v139 = vld [vmem:[#allocation5 + $0x258] sm:$0xff]
    %v140 = vld [vmem:[#allocation5 + $0x260] sm:$0xff]
    %v141 = vld [vmem:[#allocation5 + $0x268] sm:$0xff]
    %v142 = vld [vmem:[#allocation5 + $0x270] sm:$0xff]
    %v143 = vld [vmem:[#allocation5 + $0x278] sm:$0xff]
    %v144 = vld [vmem:[#allocation5 + $0x280] sm:$0xff]
    %v145 = vld [vmem:[#allocation5 + $0x288] sm:$0xff]
    %v146 = vld [vmem:[#allocation5 + $0x290] sm:$0xff]
    %v147 = vld [vmem:[#allocation5 + $0x298] sm:$0xff]
    %v148 = vld [vmem:[#allocation5 + $0x2a0] sm:$0xff]
    %v149 = vld [vmem:[#allocation5 + $0x2a8] sm:$0xff]
    %v150 = vld [vmem:[#allocation5 + $0x2b0] sm:$0xff]
    %v151 = vld [vmem:[#allocation5 + $0x2b8] sm:$0xff]
    %v152 = vld [vmem:[#allocation5 + $0x2c0] sm:$0xff]
    %v153 = vld [vmem:[#allocation5 + $0x2c8] sm:$0xff]
    %v154 = vld [vmem:[#allocation5 + $0x2d0] sm:$0xff]
    %v155 = vld [vmem:[#allocation5 + $0x2d8] sm:$0xff]
    %v156 = vld [vmem:[#allocation5 + $0x2e0] sm:$0xff]
    %v157 = vld [vmem:[#allocation5 + $0x2e8] sm:$0xff]
    %v158 = vld [vmem:[#allocation5 + $0x2f0] sm:$0xff]
    %v159 = vld [vmem:[#allocation5 + $0x2f8] sm:$0xff]
    %v160 = vld [vmem:[#allocation5 + $0x300] sm:$0xff]
    %v161 = vld [vmem:[#allocation5 + $0x308] sm:$0xff]
    %v162 = vld [vmem:[#allocation5 + $0x310] sm:$0xff]
    %v163 = vld [vmem:[#allocation5 + $0x318] sm:$0xff]
    %v164 = vld [vmem:[#allocation5 + $0x320] sm:$0xff]
    %v165 = vld [vmem:[#allocation5 + $0x328] sm:$0xff]
    %v166 = vld [vmem:[#allocation5 + $0x330] sm:$0xff]
    %v167 = vld [vmem:[#allocation5 + $0x338] sm:$0xff]
    %v168 = vld [vmem:[#allocation5 + $0x340] sm:$0xff]
    %v169 = vld [vmem:[#allocation5 + $0x348] sm:$0xff]
    %v170 = vld [vmem:[#allocation5 + $0x350] sm:$0xff]
    %v171 = vld [vmem:[#allocation5 + $0x358] sm:$0xff]
    %v172 = vld [vmem:[#allocation5 + $0x360] sm:$0xff]
    %v173 = vld [vmem:[#allocation5 + $0x368] sm:$0xff]
    %v174 = vld [vmem:[#allocation5 + $0x370] sm:$0xff]
    %v175 = vld [vmem:[#allocation5 + $0x378] sm:$0xff]
    %v176 = vld [vmem:[#allocation5 + $0x380] sm:$0xff]
    %v177 = vld [vmem:[#allocation5 + $0x388] sm:$0xff]
    %v178 = vld [vmem:[#allocation5 + $0x390] sm:$0xff]
    %v179 = vld [vmem:[#allocation5 + $0x398] sm:$0xff]
    %v180 = vld [vmem:[#allocation5 + $0x3a0] sm:$0xff]
    %v181 = vld [vmem:[#allocation5 + $0x3a8] sm:$0xff]
    %v182 = vld [vmem:[#allocation5 + $0x3b0] sm:$0xff]
    %v183 = vld [vmem:[#allocation5 + $0x3b8] sm:$0xff]
    %v184 = vld [vmem:[#allocation5 + $0x3c0] sm:$0xff]
    %v185 = vld [vmem:[#allocation5 + $0x3c8] sm:$0xff]
    %v186 = vld [vmem:[#allocation5 + $0x3d0] sm:$0xff]
    %v187 = vld [vmem:[#allocation5 + $0x3d8] sm:$0xff]
    %v188 = vld [vmem:[#allocation5 + $0x3e0] sm:$0xff]
    %v189 = vld [vmem:[#allocation5 + $0x3e8] sm:$0xff]
    %v190 = vld [vmem:[#allocation5 + $0x3f0] sm:$0xff]
    %v191 = vld [vmem:[#allocation5 + $0x3f8] sm:$0xff]
    %v193 = vperm.slane %v63, 0
    %v194 = vperm.slane %v63, 1
    %v197 = vand.u32 %v124, 4294901760
    %198 = vmatpush.msra.mxu0 %v197
    %v199 = vand.u32 %v120, 4294901760
    %200 = vmatpush.msra.mxu0 %v199
    %v201 = vand.u32 %v116, 4294901760
    %202 = vmatpush.msra.mxu0 %v201
    %v203 = vand.u32 %v112, 4294901760
    %204 = vmatpush.msra.mxu0 %v203
    %v205 = vand.u32 %v108, 4294901760
    %206 = vmatpush.msra.mxu0 %v205
    %v207 = vand.u32 %v104, 4294901760
    %208 = vmatpush.msra.mxu0 %v207
    %v209 = vand.u32 %v100, 4294901760
    %210 = vmatpush.msra.mxu0 %v209
    %v211 = vand.u32 %v96, 4294901760
    %212 = vmatpush.msra.mxu0 %v211
    %v213 = vand.u32 %v92, 4294901760
    %214 = vmatpush.msra.mxu0 %v213
    %v215 = vand.u32 %v88, 4294901760
    %216 = vmatpush.msra.mxu0 %v215
    %v217 = vand.u32 %v84, 4294901760
    %218 = vmatpush.msra.mxu0 %v217
    %v219 = vand.u32 %v80, 4294901760
    %220 = vmatpush.msra.mxu0 %v219
    %v221 = vand.u32 %v76, 4294901760
    %222 = vmatpush.msra.mxu0 %v221
    %v223 = vand.u32 %v72, 4294901760
    %224 = vmatpush.msra.mxu0 %v223
    %v225 = vand.u32 %v68, 4294901760
    %226 = vmatpush.msra.mxu0 %v225
    %v227 = vand.u32 %v64, 4294901760
    %228 = vmatpush.msra.mxu0 %v227
    %v229 = vand.u32 %v193, 4294901760
    %v230 = vsub.f32 %v193, %v229
    %v231 = vand.u32 %v230, 4294901760
    %v232 = vsub.f32 %v230, %v231
    %v233 = vand.u32 %v232, 4294901760
    %234 = vmatmul.f32.gmra.mxu0 %v233
    %v235 = vpop.f32.mrf.mxu0
    %v236 = vadd.f32 0.0, %v235
    %237 = vdwg.mxu0
    %v238 = vand.u32 %v124, 4294901760
    %v239 = vsub.f32 %v124, %v238
    %v240 = vand.u32 %v239, 4294901760
    %v241 = vsub.f32 %v239, %v240
    %v242 = vand.u32 %v241, 4294901760
    %243 = vmatpush.msra.mxu0 %v242
    %v244 = vand.u32 %v120, 4294901760
    %v245 = vsub.f32 %v120, %v244
    %v246 = vand.u32 %v245, 4294901760
    %v247 = vsub.f32 %v245, %v246
    %v248 = vand.u32 %v247, 4294901760
    %249 = vmatpush.msra.mxu0 %v248
    %v250 = vand.u32 %v116, 4294901760
    %v251 = vsub.f32 %v116, %v250
    %v252 = vand.u32 %v251, 4294901760
    %v253 = vsub.f32 %v251, %v252
    %v254 = vand.u32 %v253, 4294901760
    %255 = vmatpush.msra.mxu0 %v254
    %v256 = vand.u32 %v112, 4294901760
    %v257 = vsub.f32 %v112, %v256
    %v258 = vand.u32 %v257, 4294901760
    %v259 = vsub.f32 %v257, %v258
    %v260 = vand.u32 %v259, 4294901760
    %261 = vmatpush.msra.mxu0 %v260
    %v262 = vand.u32 %v108, 4294901760
    %v263 = vsub.f32 %v108, %v262
    %v264 = vand.u32 %v263, 4294901760
    %v265 = vsub.f32 %v263, %v264
    %v266 = vand.u32 %v265, 4294901760
    %267 = vmatpush.msra.mxu0 %v266
    %v268 = vand.u32 %v104, 4294901760
    %v269 = vsub.f32 %v104, %v268
    %v270 = vand.u32 %v269, 4294901760
    %v271 = vsub.f32 %v269, %v270
    %v272 = vand.u32 %v271, 4294901760
    %273 = vmatpush.msra.mxu0 %v272
    %v274 = vand.u32 %v100, 4294901760
    %v275 = vsub.f32 %v100, %v274
    %v276 = vand.u32 %v275, 4294901760
    %v277 = vsub.f32 %v275, %v276
    %v278 = vand.u32 %v277, 4294901760
    %279 = vmatpush.msra.mxu0 %v278
    %v280 = vand.u32 %v96, 4294901760
    %v281 = vsub.f32 %v96, %v280
    %v282 = vand.u32 %v281, 4294901760
    %v283 = vsub.f32 %v281, %v282
    %v284 = vand.u32 %v283, 4294901760
    %285 = vmatpush.msra.mxu0 %v284
    %v286 = vand.u32 %v92, 4294901760
    %v287 = vsub.f32 %v92, %v286
    %v288 = vand.u32 %v287, 4294901760
    %v289 = vsub.f32 %v287, %v288
    %v290 = vand.u32 %v289, 4294901760
    %291 = vmatpush.msra.mxu0 %v290
    %v292 = vand.u32 %v88, 4294901760
    %v293 = vsub.f32 %v88, %v292
    %v294 = vand.u32 %v293, 4294901760
    %v295 = vsub.f32 %v293, %v294
    %v296 = vand.u32 %v295, 4294901760
    %297 = vmatpush.msra.mxu0 %v296
    %v298 = vand.u32 %v84, 4294901760
    %v299 = vsub.f32 %v84, %v298
    %v300 = vand.u32 %v299, 4294901760
    %v301 = vsub.f32 %v299, %v300
    %v302 = vand.u32 %v301, 4294901760
    %303 = vmatpush.msra.mxu0 %v302
    %v304 = vand.u32 %v80, 4294901760
    %v305 = vsub.f32 %v80, %v304
    %v306 = vand.u32 %v305, 4294901760
    %v307 = vsub.f32 %v305, %v306
    %v308 = vand.u32 %v307, 4294901760
    %309 = vmatpush.msra.mxu0 %v308
    %v310 = vand.u32 %v76, 4294901760
    %v311 = vsub.f32 %v76, %v310
    %v312 = vand.u32 %v311, 4294901760
    %v313 = vsub.f32 %v311, %v312
    %v314 = vand.u32 %v313, 4294901760
    %315 = vmatpush.msra.mxu0 %v314
    %v316 = vand.u32 %v72, 4294901760
    %v317 = vsub.f32 %v72, %v316
    %v318 = vand.u32 %v317, 4294901760
    %v319 = vsub.f32 %v317, %v318
    %v320 = vand.u32 %v319, 4294901760
    %321 = vmatpush.msra.mxu0 %v320
    %v322 = vand.u32 %v68, 4294901760
    %v323 = vsub.f32 %v68, %v322
    %v324 = vand.u32 %v323, 4294901760
    %v325 = vsub.f32 %v323, %v324
    %v326 = vand.u32 %v325, 4294901760
    %327 = vmatpush.msra.mxu0 %v326
    %v328 = vand.u32 %v64, 4294901760
    %v329 = vsub.f32 %v64, %v328
    %v330 = vand.u32 %v329, 4294901760
    %v331 = vsub.f32 %v329, %v330
    %v332 = vand.u32 %v331, 4294901760
    %333 = vmatpush.msra.mxu0 %v332
    %v334 = vand.u32 %v193, 4294901760
    %335 = vmatmul.f32.gmra.mxu0 %v334
    %v336 = vpop.f32.mrf.mxu0
    %v337 = vadd.f32 %v236, %v336
    %338 = vdwg.mxu0
    %v339 = vand.u32 %v124, 4294901760
    %v340 = vsub.f32 %v124, %v339
    %341 = vmatpush.msra.mxu0 %v340
    %v342 = vand.u32 %v120, 4294901760
    %v343 = vsub.f32 %v120, %v342
    %344 = vmatpush.msra.mxu0 %v343
    %v345 = vand.u32 %v116, 4294901760
    %v346 = vsub.f32 %v116, %v345
    %347 = vmatpush.msra.mxu0 %v346
    %v348 = vand.u32 %v112, 4294901760
    %v349 = vsub.f32 %v112, %v348
    %350 = vmatpush.msra.mxu0 %v349
    %v351 = vand.u32 %v108, 4294901760
    %v352 = vsub.f32 %v108, %v351
    %353 = vmatpush.msra.mxu0 %v352
    %v354 = vand.u32 %v104, 4294901760
    %v355 = vsub.f32 %v104, %v354
    %356 = vmatpush.msra.mxu0 %v355
    %v357 = vand.u32 %v100, 4294901760
    %v358 = vsub.f32 %v100, %v357
    %359 = vmatpush.msra.mxu0 %v358
    %v360 = vand.u32 %v96, 4294901760
    %v361 = vsub.f32 %v96, %v360
    %362 = vmatpush.msra.mxu0 %v361
    %v363 = vand.u32 %v92, 4294901760
    %v364 = vsub.f32 %v92, %v363
    %365 = vmatpush.msra.mxu0 %v364
    %v366 = vand.u32 %v88, 4294901760
    %v367 = vsub.f32 %v88, %v366
    %368 = vmatpush.msra.mxu0 %v367
    %v369 = vand.u32 %v84, 4294901760
    %v370 = vsub.f32 %v84, %v369
    %371 = vmatpush.msra.mxu0 %v370
    %v372 = vand.u32 %v80, 4294901760
    %v373 = vsub.f32 %v80, %v372
    %374 = vmatpush.msra.mxu0 %v373
    %v375 = vand.u32 %v76, 4294901760
    %v376 = vsub.f32 %v76, %v375
    %377 = vmatpush.msra.mxu0 %v376
    %v378 = vand.u32 %v72, 4294901760
    %v379 = vsub.f32 %v72, %v378
    %380 = vmatpush.msra.mxu0 %v379
    %v381 = vand.u32 %v68, 4294901760
    %v382 = vsub.f32 %v68, %v381
    %383 = vmatpush.msra.mxu0 %v382
    %v384 = vand.u32 %v64, 4294901760
    %v385 = vsub.f32 %v64, %v384
    %386 = vmatpush.msra.mxu0 %v385
    %v387 = vand.u32 %v193, 4294901760
    %v388 = vsub.f32 %v193, %v387
    %389 = vmatmul.f32.gmra.mxu0 %v388
    %v390 = vpop.f32.mrf.mxu0
    %v391 = vadd.f32 %v337, %v390
    %392 = vdwg.mxu0
    %v393 = vand.u32 %v124, 4294901760
    %394 = vmatpush.msra.mxu0 %v393
    %v395 = vand.u32 %v120, 4294901760
    %396 = vmatpush.msra.mxu0 %v395
    %v397 = vand.u32 %v116, 4294901760
    %398 = vmatpush.msra.mxu0 %v397
    %v399 = vand.u32 %v112, 4294901760
    %400 = vmatpush.msra.mxu0 %v399
    %v401 = vand.u32 %v108, 4294901760
    %402 = vmatpush.msra.mxu0 %v401
    %v403 = vand.u32 %v104, 4294901760
    %404 = vmatpush.msra.mxu0 %v403
    %v405 = vand.u32 %v100, 4294901760
    %406 = vmatpush.msra.mxu0 %v405
    %v407 = vand.u32 %v96, 4294901760
    %408 = vmatpush.msra.mxu0 %v407
    %v409 = vand.u32 %v92, 4294901760
    %410 = vmatpush.msra.mxu0 %v409
    %v411 = vand.u32 %v88, 4294901760
    %412 = vmatpush.msra.mxu0 %v411
    %v413 = vand.u32 %v84, 4294901760
    %414 = vmatpush.msra.mxu0 %v413
    %v415 = vand.u32 %v80, 4294901760
    %416 = vmatpush.msra.mxu0 %v415
    %v417 = vand.u32 %v76, 4294901760
    %418 = vmatpush.msra.mxu0 %v417
    %v419 = vand.u32 %v72, 4294901760
    %420 = vmatpush.msra.mxu0 %v419
    %v421 = vand.u32 %v68, 4294901760
    %422 = vmatpush.msra.mxu0 %v421
    %v423 = vand.u32 %v64, 4294901760
    %424 = vmatpush.msra.mxu0 %v423
    %v425 = vand.u32 %v193, 4294901760
    %v426 = vsub.f32 %v193, %v425
    %v427 = vand.u32 %v426, 4294901760
    %428 = vmatmul.f32.gmra.mxu0 %v427
    %v429 = vpop.f32.mrf.mxu0
    %v430 = vadd.f32 %v391, %v429
    %431 = vdwg.mxu0
    %v432 = vand.u32 %v124, 4294901760
    %v433 = vsub.f32 %v124, %v432
    %v434 = vand.u32 %v433, 4294901760
    %435 = vmatpush.msra.mxu0 %v434
    %v436 = vand.u32 %v120, 4294901760
    %v437 = vsub.f32 %v120, %v436
    %v438 = vand.u32 %v437, 4294901760
    %439 = vmatpush.msra.mxu0 %v438
    %v440 = vand.u32 %v116, 4294901760
    %v441 = vsub.f32 %v116, %v440
    %v442 = vand.u32 %v441, 4294901760
    %443 = vmatpush.msra.mxu0 %v442
    %v444 = vand.u32 %v112, 4294901760
    %v445 = vsub.f32 %v112, %v444
    %v446 = vand.u32 %v445, 4294901760
    %447 = vmatpush.msra.mxu0 %v446
    %v448 = vand.u32 %v108, 4294901760
    %v449 = vsub.f32 %v108, %v448
    %v450 = vand.u32 %v449, 4294901760
    %451 = vmatpush.msra.mxu0 %v450
    %v452 = vand.u32 %v104, 4294901760
    %v453 = vsub.f32 %v104, %v452
    %v454 = vand.u32 %v453, 4294901760
    %455 = vmatpush.msra.mxu0 %v454
    %v456 = vand.u32 %v100, 4294901760
    %v457 = vsub.f32 %v100, %v456
    %v458 = vand.u32 %v457, 4294901760
    %459 = vmatpush.msra.mxu0 %v458
    %v460 = vand.u32 %v96, 4294901760
    %v461 = vsub.f32 %v96, %v460
    %v462 = vand.u32 %v461, 4294901760
    %463 = vmatpush.msra.mxu0 %v462
    %v464 = vand.u32 %v92, 4294901760
    %v465 = vsub.f32 %v92, %v464
    %v466 = vand.u32 %v465, 4294901760
    %467 = vmatpush.msra.mxu0 %v466
    %v468 = vand.u32 %v88, 4294901760
    %v469 = vsub.f32 %v88, %v468
    %v470 = vand.u32 %v469, 4294901760
    %471 = vmatpush.msra.mxu0 %v470
    %v472 = vand.u32 %v84, 4294901760
    %v473 = vsub.f32 %v84, %v472
    %v474 = vand.u32 %v473, 4294901760
    %475 = vmatpush.msra.mxu0 %v474
    %v476 = vand.u32 %v80, 4294901760
    %v477 = vsub.f32 %v80, %v476
    %v478 = vand.u32 %v477, 4294901760
    %479 = vmatpush.msra.mxu0 %v478
    %v480 = vand.u32 %v76, 4294901760
    %v481 = vsub.f32 %v76, %v480
    %v482 = vand.u32 %v481, 4294901760
    %483 = vmatpush.msra.mxu0 %v482
    %v484 = vand.u32 %v72, 4294901760
    %v485 = vsub.f32 %v72, %v484
    %v486 = vand.u32 %v485, 4294901760
    %487 = vmatpush.msra.mxu0 %v486
    %v488 = vand.u32 %v68, 4294901760
    %v489 = vsub.f32 %v68, %v488
    %v490 = vand.u32 %v489, 4294901760
    %491 = vmatpush.msra.mxu0 %v490
    %v492 = vand.u32 %v64, 4294901760
    %v493 = vsub.f32 %v64, %v492
    %v494 = vand.u32 %v493, 4294901760
    %495 = vmatpush.msra.mxu0 %v494
    %v496 = vand.u32 %v193, 4294901760
    %497 = vmatmul.f32.gmra.mxu0 %v496
    %v498 = vpop.f32.mrf.mxu0
    %v499 = vadd.f32 %v430, %v498
    %500 = vdwg.mxu0
    %v501 = vand.u32 %v124, 4294901760
    %502 = vmatpush.msra.mxu0 %v501
    %v503 = vand.u32 %v120, 4294901760
    %504 = vmatpush.msra.mxu0 %v503
    %v505 = vand.u32 %v116, 4294901760
    %506 = vmatpush.msra.mxu0 %v505
    %v507 = vand.u32 %v112, 4294901760
    %508 = vmatpush.msra.mxu0 %v507
    %v509 = vand.u32 %v108, 4294901760
    %510 = vmatpush.msra.mxu0 %v509
    %v511 = vand.u32 %v104, 4294901760
    %512 = vmatpush.msra.mxu0 %v511
    %v513 = vand.u32 %v100, 4294901760
    %514 = vmatpush.msra.mxu0 %v513
    %v515 = vand.u32 %v96, 4294901760
    %516 = vmatpush.msra.mxu0 %v515
    %v517 = vand.u32 %v92, 4294901760
    %518 = vmatpush.msra.mxu0 %v517
    %v519 = vand.u32 %v88, 4294901760
    %520 = vmatpush.msra.mxu0 %v519
    %v521 = vand.u32 %v84, 4294901760
    %522 = vmatpush.msra.mxu0 %v521
    %v523 = vand.u32 %v80, 4294901760
    %524 = vmatpush.msra.mxu0 %v523
    %v525 = vand.u32 %v76, 4294901760
    %526 = vmatpush.msra.mxu0 %v525
    %v527 = vand.u32 %v72, 4294901760
    %528 = vmatpush.msra.mxu0 %v527
    %v529 = vand.u32 %v68, 4294901760
    %530 = vmatpush.msra.mxu0 %v529
    %v531 = vand.u32 %v64, 4294901760
    %532 = vmatpush.msra.mxu0 %v531
    %v533 = vand.u32 %v193, 4294901760
    %534 = vmatmul.f32.gmra.mxu0 %v533
    %v535 = vpop.f32.mrf.mxu0
    %v536 = vadd.f32 %v499, %v535
    %537 = vdwg.mxu0
    %v538 = vand.u32 %v188, 4294901760
    %539 = vmatpush.msra.mxu0 %v538
    %v540 = vand.u32 %v184, 4294901760
    %541 = vmatpush.msra.mxu0 %v540
    %v542 = vand.u32 %v180, 4294901760
    %543 = vmatpush.msra.mxu0 %v542
    %v544 = vand.u32 %v176, 4294901760
    %545 = vmatpush.msra.mxu0 %v544
    %v546 = vand.u32 %v172, 4294901760
    %547 = vmatpush.msra.mxu0 %v546
    %v548 = vand.u32 %v168, 4294901760
    %549 = vmatpush.msra.mxu0 %v548
    %v550 = vand.u32 %v164, 4294901760
    %551 = vmatpush.msra.mxu0 %v550
    %v552 = vand.u32 %v160, 4294901760
    %553 = vmatpush.msra.mxu0 %v552
    %v554 = vand.u32 %v156, 4294901760
    %555 = vmatpush.msra.mxu0 %v554
    %v556 = vand.u32 %v152, 4294901760
    %557 = vmatpush.msra.mxu0 %v556
    %v558 = vand.u32 %v148, 4294901760
    %559 = vmatpush.msra.mxu0 %v558
    %v560 = vand.u32 %v144, 4294901760
    %561 = vmatpush.msra.mxu0 %v560
    %v562 = vand.u32 %v140, 4294901760
    %563 = vmatpush.msra.mxu0 %v562
    %v564 = vand.u32 %v136, 4294901760
    %565 = vmatpush.msra.mxu0 %v564
    %v566 = vand.u32 %v132, 4294901760
    %567 = vmatpush.msra.mxu0 %v566
    %v568 = vand.u32 %v128, 4294901760
    %569 = vmatpush.msra.mxu0 %v568
    %v570 = vand.u32 %v194, 4294901760
    %v571 = vsub.f32 %v194, %v570
    %v572 = vand.u32 %v571, 4294901760
    %v573 = vsub.f32 %v571, %v572
    %v574 = vand.u32 %v573, 4294901760
    %575 = vmatmul.f32.gmra.mxu0 %v574
    %v576 = vpop.f32.mrf.mxu0
    %v577 = vadd.f32 %v536, %v576
    %578 = vdwg.mxu0
    %v579 = vand.u32 %v188, 4294901760
    %v580 = vsub.f32 %v188, %v579
    %v581 = vand.u32 %v580, 4294901760
    %v582 = vsub.f32 %v580, %v581
    %v583 = vand.u32 %v582, 4294901760
    %584 = vmatpush.msra.mxu0 %v583
    %v585 = vand.u32 %v184, 4294901760
    %v586 = vsub.f32 %v184, %v585
    %v587 = vand.u32 %v586, 4294901760
    %v588 = vsub.f32 %v586, %v587
    %v589 = vand.u32 %v588, 4294901760
    %590 = vmatpush.msra.mxu0 %v589
    %v591 = vand.u32 %v180, 4294901760
    %v592 = vsub.f32 %v180, %v591
    %v593 = vand.u32 %v592, 4294901760
    %v594 = vsub.f32 %v592, %v593
    %v595 = vand.u32 %v594, 4294901760
    %596 = vmatpush.msra.mxu0 %v595
    %v597 = vand.u32 %v176, 4294901760
    %v598 = vsub.f32 %v176, %v597
    %v599 = vand.u32 %v598, 4294901760
    %v600 = vsub.f32 %v598, %v599
    %v601 = vand.u32 %v600, 4294901760
    %602 = vmatpush.msra.mxu0 %v601
    %v603 = vand.u32 %v172, 4294901760
    %v604 = vsub.f32 %v172, %v603
    %v605 = vand.u32 %v604, 4294901760
    %v606 = vsub.f32 %v604, %v605
    %v607 = vand.u32 %v606, 4294901760
    %608 = vmatpush.msra.mxu0 %v607
    %v609 = vand.u32 %v168, 4294901760
    %v610 = vsub.f32 %v168, %v609
    %v611 = vand.u32 %v610, 4294901760
    %v612 = vsub.f32 %v610, %v611
    %v613 = vand.u32 %v612, 4294901760
    %614 = vmatpush.msra.mxu0 %v613
    %v615 = vand.u32 %v164, 4294901760
    %v616 = vsub.f32 %v164, %v615
    %v617 = vand.u32 %v616, 4294901760
    %v618 = vsub.f32 %v616, %v617
    %v619 = vand.u32 %v618, 4294901760
    %620 = vmatpush.msra.mxu0 %v619
    %v621 = vand.u32 %v160, 4294901760
    %v622 = vsub.f32 %v160, %v621
    %v623 = vand.u32 %v622, 4294901760
    %v624 = vsub.f32 %v622, %v623
    %v625 = vand.u32 %v624, 4294901760
    %626 = vmatpush.msra.mxu0 %v625
    %v627 = vand.u32 %v156, 4294901760
    %v628 = vsub.f32 %v156, %v627
    %v629 = vand.u32 %v628, 4294901760
    %v630 = vsub.f32 %v628, %v629
    %v631 = vand.u32 %v630, 4294901760
    %632 = vmatpush.msra.mxu0 %v631
    %v633 = vand.u32 %v152, 4294901760
    %v634 = vsub.f32 %v152, %v633
    %v635 = vand.u32 %v634, 4294901760
    %v636 = vsub.f32 %v634, %v635
    %v637 = vand.u32 %v636, 4294901760
    %638 = vmatpush.msra.mxu0 %v637
    %v639 = vand.u32 %v148, 4294901760
    %v640 = vsub.f32 %v148, %v639
    %v641 = vand.u32 %v640, 4294901760
    %v642 = vsub.f32 %v640, %v641
    %v643 = vand.u32 %v642, 4294901760
    %644 = vmatpush.msra.mxu0 %v643
    %v645 = vand.u32 %v144, 4294901760
    %v646 = vsub.f32 %v144, %v645
    %v647 = vand.u32 %v646, 4294901760
    %v648 = vsub.f32 %v646, %v647
    %v649 = vand.u32 %v648, 4294901760
    %650 = vmatpush.msra.mxu0 %v649
    %v651 = vand.u32 %v140, 4294901760
    %v652 = vsub.f32 %v140, %v651
    %v653 = vand.u32 %v652, 4294901760
    %v654 = vsub.f32 %v652, %v653
    %v655 = vand.u32 %v654, 4294901760
    %656 = vmatpush.msra.mxu0 %v655
    %v657 = vand.u32 %v136, 4294901760
    %v658 = vsub.f32 %v136, %v657
    %v659 = vand.u32 %v658, 4294901760
    %v660 = vsub.f32 %v658, %v659
    %v661 = vand.u32 %v660, 4294901760
    %662 = vmatpush.msra.mxu0 %v661
    %v663 = vand.u32 %v132, 4294901760
    %v664 = vsub.f32 %v132, %v663
    %v665 = vand.u32 %v664, 4294901760
    %v666 = vsub.f32 %v664, %v665
    %v667 = vand.u32 %v666, 4294901760
    %668 = vmatpush.msra.mxu0 %v667
    %v669 = vand.u32 %v128, 4294901760
    %v670 = vsub.f32 %v128, %v669
    %v671 = vand.u32 %v670, 4294901760
    %v672 = vsub.f32 %v670, %v671
    %v673 = vand.u32 %v672, 4294901760
    %674 = vmatpush.msra.mxu0 %v673
    %v675 = vand.u32 %v194, 4294901760
    %676 = vmatmul.f32.gmra.mxu0 %v675
    %v677 = vpop.f32.mrf.mxu0
    %v678 = vadd.f32 %v577, %v677
    %679 = vdwg.mxu0
    %v680 = vand.u32 %v188, 4294901760
    %v681 = vsub.f32 %v188, %v680
    %682 = vmatpush.msra.mxu0 %v681
    %v683 = vand.u32 %v184, 4294901760
    %v684 = vsub.f32 %v184, %v683
    %685 = vmatpush.msra.mxu0 %v684
    %v686 = vand.u32 %v180, 4294901760
    %v687 = vsub.f32 %v180, %v686
    %688 = vmatpush.msra.mxu0 %v687
    %v689 = vand.u32 %v176, 4294901760
    %v690 = vsub.f32 %v176, %v689
    %691 = vmatpush.msra.mxu0 %v690
    %v692 = vand.u32 %v172, 4294901760
    %v693 = vsub.f32 %v172, %v692
    %694 = vmatpush.msra.mxu0 %v693
    %v695 = vand.u32 %v168, 4294901760
    %v696 = vsub.f32 %v168, %v695
    %697 = vmatpush.msra.mxu0 %v696
    %v698 = vand.u32 %v164, 4294901760
    %v699 = vsub.f32 %v164, %v698
    %700 = vmatpush.msra.mxu0 %v699
    %v701 = vand.u32 %v160, 4294901760
    %v702 = vsub.f32 %v160, %v701
    %703 = vmatpush.msra.mxu0 %v702
    %v704 = vand.u32 %v156, 4294901760
    %v705 = vsub.f32 %v156, %v704
    %706 = vmatpush.msra.mxu0 %v705
    %v707 = vand.u32 %v152, 4294901760
    %v708 = vsub.f32 %v152, %v707
    %709 = vmatpush.msra.mxu0 %v708
    %v710 = vand.u32 %v148, 4294901760
    %v711 = vsub.f32 %v148, %v710
    %712 = vmatpush.msra.mxu0 %v711
    %v713 = vand.u32 %v144, 4294901760
    %v714 = vsub.f32 %v144, %v713
    %715 = vmatpush.msra.mxu0 %v714
    %v716 = vand.u32 %v140, 4294901760
    %v717 = vsub.f32 %v140, %v716
    %718 = vmatpush.msra.mxu0 %v717
    %v719 = vand.u32 %v136, 4294901760
    %v720 = vsub.f32 %v136, %v719
    %721 = vmatpush.msra.mxu0 %v720
    %v722 = vand.u32 %v132, 4294901760
    %v723 = vsub.f32 %v132, %v722
    %724 = vmatpush.msra.mxu0 %v723
    %v725 = vand.u32 %v128, 4294901760
    %v726 = vsub.f32 %v128, %v725
    %727 = vmatpush.msra.mxu0 %v726
    %v728 = vand.u32 %v194, 4294901760
    %v729 = vsub.f32 %v194, %v728
    %730 = vmatmul.f32.gmra.mxu0 %v729
    %v731 = vpop.f32.mrf.mxu0
    %v732 = vadd.f32 %v678, %v731
    %733 = vdwg.mxu0
    %v734 = vand.u32 %v188, 4294901760
    %735 = vmatpush.msra.mxu0 %v734
    %v736 = vand.u32 %v184, 4294901760
    %737 = vmatpush.msra.mxu0 %v736
    %v738 = vand.u32 %v180, 4294901760
    %739 = vmatpush.msra.mxu0 %v738
    %v740 = vand.u32 %v176, 4294901760
    %741 = vmatpush.msra.mxu0 %v740
    %v742 = vand.u32 %v172, 4294901760
    %743 = vmatpush.msra.mxu0 %v742
    %v744 = vand.u32 %v168, 4294901760
    %745 = vmatpush.msra.mxu0 %v744
    %v746 = vand.u32 %v164, 4294901760
    %747 = vmatpush.msra.mxu0 %v746
    %v748 = vand.u32 %v160, 4294901760
    %749 = vmatpush.msra.mxu0 %v748
    %v750 = vand.u32 %v156, 4294901760
    %751 = vmatpush.msra.mxu0 %v750
    %v752 = vand.u32 %v152, 4294901760
    %753 = vmatpush.msra.mxu0 %v752
    %v754 = vand.u32 %v148, 4294901760
    %755 = vmatpush.msra.mxu0 %v754
    %v756 = vand.u32 %v144, 4294901760
    %757 = vmatpush.msra.mxu0 %v756
    %v758 = vand.u32 %v140, 4294901760
    %759 = vmatpush.msra.mxu0 %v758
    %v760 = vand.u32 %v136, 4294901760
    %761 = vmatpush.msra.mxu0 %v760
    %v762 = vand.u32 %v132, 4294901760
    %763 = vmatpush.msra.mxu0 %v762
    %v764 = vand.u32 %v128, 4294901760
    %765 = vmatpush.msra.mxu0 %v764
    %v766 = vand.u32 %v194, 4294901760
    %v767 = vsub.f32 %v194, %v766
    %v768 = vand.u32 %v767, 4294901760
    %769 = vmatmul.f32.gmra.mxu0 %v768
    %v770 = vpop.f32.mrf.mxu0
    %v771 = vadd.f32 %v732, %v770
    %772 = vdwg.mxu0
    %v773 = vand.u32 %v188, 4294901760
    %v774 = vsub.f32 %v188, %v773
    %v775 = vand.u32 %v774, 4294901760
    %776 = vmatpush.msra.mxu0 %v775
    %v777 = vand.u32 %v184, 4294901760
    %v778 = vsub.f32 %v184, %v777
    %v779 = vand.u32 %v778, 4294901760
    %780 = vmatpush.msra.mxu0 %v779
    %v781 = vand.u32 %v180, 4294901760
    %v782 = vsub.f32 %v180, %v781
    %v783 = vand.u32 %v782, 4294901760
    %784 = vmatpush.msra.mxu0 %v783
    %v785 = vand.u32 %v176, 4294901760
    %v786 = vsub.f32 %v176, %v785
    %v787 = vand.u32 %v786, 4294901760
    %788 = vmatpush.msra.mxu0 %v787
    %v789 = vand.u32 %v172, 4294901760
    %v790 = vsub.f32 %v172, %v789
    %v791 = vand.u32 %v790, 4294901760
    %792 = vmatpush.msra.mxu0 %v791
    %v793 = vand.u32 %v168, 4294901760
    %v794 = vsub.f32 %v168, %v793
    %v795 = vand.u32 %v794, 4294901760
    %796 = vmatpush.msra.mxu0 %v795
    %v797 = vand.u32 %v164, 4294901760
    %v798 = vsub.f32 %v164, %v797
    %v799 = vand.u32 %v798, 4294901760
    %800 = vmatpush.msra.mxu0 %v799
    %v801 = vand.u32 %v160, 4294901760
    %v802 = vsub.f32 %v160, %v801
    %v803 = vand.u32 %v802, 4294901760
    %804 = vmatpush.msra.mxu0 %v803
    %v805 = vand.u32 %v156, 4294901760
    %v806 = vsub.f32 %v156, %v805
    %v807 = vand.u32 %v806, 4294901760
    %808 = vmatpush.msra.mxu0 %v807
    %v809 = vand.u32 %v152, 4294901760
    %v810 = vsub.f32 %v152, %v809
    %v811 = vand.u32 %v810, 4294901760
    %812 = vmatpush.msra.mxu0 %v811
    %v813 = vand.u32 %v148, 4294901760
    %v814 = vsub.f32 %v148, %v813
    %v815 = vand.u32 %v814, 4294901760
    %816 = vmatpush.msra.mxu0 %v815
    %v817 = vand.u32 %v144, 4294901760
    %v818 = vsub.f32 %v144, %v817
    %v819 = vand.u32 %v818, 4294901760
    %820 = vmatpush.msra.mxu0 %v819
    %v821 = vand.u32 %v140, 4294901760
    %v822 = vsub.f32 %v140, %v821
    %v823 = vand.u32 %v822, 4294901760
    %824 = vmatpush.msra.mxu0 %v823
    %v825 = vand.u32 %v136, 4294901760
    %v826 = vsub.f32 %v136, %v825
    %v827 = vand.u32 %v826, 4294901760
    %828 = vmatpush.msra.mxu0 %v827
    %v829 = vand.u32 %v132, 4294901760
    %v830 = vsub.f32 %v132, %v829
    %v831 = vand.u32 %v830, 4294901760
    %832 = vmatpush.msra.mxu0 %v831
    %v833 = vand.u32 %v128, 4294901760
    %v834 = vsub.f32 %v128, %v833
    %v835 = vand.u32 %v834, 4294901760
    %836 = vmatpush.msra.mxu0 %v835
    %v837 = vand.u32 %v194, 4294901760
    %838 = vmatmul.f32.gmra.mxu0 %v837
    %v839 = vpop.f32.mrf.mxu0
    %v840 = vadd.f32 %v771, %v839
    %841 = vdwg.mxu0
    %v842 = vand.u32 %v188, 4294901760
    %843 = vmatpush.msra.mxu0 %v842
    %v844 = vand.u32 %v184, 4294901760
    %845 = vmatpush.msra.mxu0 %v844
    %v846 = vand.u32 %v180, 4294901760
    %847 = vmatpush.msra.mxu0 %v846
    %v848 = vand.u32 %v176, 4294901760
    %849 = vmatpush.msra.mxu0 %v848
    %v850 = vand.u32 %v172, 4294901760
    %851 = vmatpush.msra.mxu0 %v850
    %v852 = vand.u32 %v168, 4294901760
    %853 = vmatpush.msra.mxu0 %v852
    %v854 = vand.u32 %v164, 4294901760
    %855 = vmatpush.msra.mxu0 %v854
    %v856 = vand.u32 %v160, 4294901760
    %857 = vmatpush.msra.mxu0 %v856
    %v858 = vand.u32 %v156, 4294901760
    %859 = vmatpush.msra.mxu0 %v858
    %v860 = vand.u32 %v152, 4294901760
    %861 = vmatpush.msra.mxu0 %v860
    %v862 = vand.u32 %v148, 4294901760
    %863 = vmatpush.msra.mxu0 %v862
    %v864 = vand.u32 %v144, 4294901760
    %865 = vmatpush.msra.mxu0 %v864
    %v866 = vand.u32 %v140, 4294901760
    %867 = vmatpush.msra.mxu0 %v866
    %v868 = vand.u32 %v136, 4294901760
    %869 = vmatpush.msra.mxu0 %v868
    %v870 = vand.u32 %v132, 4294901760
    %871 = vmatpush.msra.mxu0 %v870
    %v872 = vand.u32 %v128, 4294901760
    %873 = vmatpush.msra.mxu0 %v872
    %v874 = vand.u32 %v194, 4294901760
    %875 = vmatmul.f32.gmra.mxu0 %v874
    %v876 = vpop.f32.mrf.mxu0
    %v877 = vadd.f32 %v840, %v876
    %878 = vdwg.mxu0
    %v879 = vand.u32 %v125, 4294901760
    %880 = vmatpush.msra.mxu0 %v879
    %v881 = vand.u32 %v121, 4294901760
    %882 = vmatpush.msra.mxu0 %v881
    %v883 = vand.u32 %v117, 4294901760
    %884 = vmatpush.msra.mxu0 %v883
    %v885 = vand.u32 %v113, 4294901760
    %886 = vmatpush.msra.mxu0 %v885
    %v887 = vand.u32 %v109, 4294901760
    %888 = vmatpush.msra.mxu0 %v887
    %v889 = vand.u32 %v105, 4294901760
    %890 = vmatpush.msra.mxu0 %v889
    %v891 = vand.u32 %v101, 4294901760
    %892 = vmatpush.msra.mxu0 %v891
    %v893 = vand.u32 %v97, 4294901760
    %894 = vmatpush.msra.mxu0 %v893
    %v895 = vand.u32 %v93, 4294901760
    %896 = vmatpush.msra.mxu0 %v895
    %v897 = vand.u32 %v89, 4294901760
    %898 = vmatpush.msra.mxu0 %v897
    %v899 = vand.u32 %v85, 4294901760
    %900 = vmatpush.msra.mxu0 %v899
    %v901 = vand.u32 %v81, 4294901760
    %902 = vmatpush.msra.mxu0 %v901
    %v903 = vand.u32 %v77, 4294901760
    %904 = vmatpush.msra.mxu0 %v903
    %v905 = vand.u32 %v73, 4294901760
    %906 = vmatpush.msra.mxu0 %v905
    %v907 = vand.u32 %v69, 4294901760
    %908 = vmatpush.msra.mxu0 %v907
    %v909 = vand.u32 %v65, 4294901760
    %910 = vmatpush.msra.mxu0 %v909
    %v911 = vand.u32 %v193, 4294901760
    %v912 = vsub.f32 %v193, %v911
    %v913 = vand.u32 %v912, 4294901760
    %v914 = vsub.f32 %v912, %v913
    %v915 = vand.u32 %v914, 4294901760
    %916 = vmatmul.f32.gmra.mxu0 %v915
    %v917 = vpop.f32.mrf.mxu0
    %v918 = vadd.f32 0.0, %v917
    %919 = vdwg.mxu0
    %v920 = vand.u32 %v125, 4294901760
    %v921 = vsub.f32 %v125, %v920
    %v922 = vand.u32 %v921, 4294901760
    %v923 = vsub.f32 %v921, %v922
    %v924 = vand.u32 %v923, 4294901760
    %925 = vmatpush.msra.mxu0 %v924
    %v926 = vand.u32 %v121, 4294901760
    %v927 = vsub.f32 %v121, %v926
    %v928 = vand.u32 %v927, 4294901760
    %v929 = vsub.f32 %v927, %v928
    %v930 = vand.u32 %v929, 4294901760
    %931 = vmatpush.msra.mxu0 %v930
    %v932 = vand.u32 %v117, 4294901760
    %v933 = vsub.f32 %v117, %v932
    %v934 = vand.u32 %v933, 4294901760
    %v935 = vsub.f32 %v933, %v934
    %v936 = vand.u32 %v935, 4294901760
    %937 = vmatpush.msra.mxu0 %v936
    %v938 = vand.u32 %v113, 4294901760
    %v939 = vsub.f32 %v113, %v938
    %v940 = vand.u32 %v939, 4294901760
    %v941 = vsub.f32 %v939, %v940
    %v942 = vand.u32 %v941, 4294901760
    %943 = vmatpush.msra.mxu0 %v942
    %v944 = vand.u32 %v109, 4294901760
    %v945 = vsub.f32 %v109, %v944
    %v946 = vand.u32 %v945, 4294901760
    %v947 = vsub.f32 %v945, %v946
    %v948 = vand.u32 %v947, 4294901760
    %949 = vmatpush.msra.mxu0 %v948
    %v950 = vand.u32 %v105, 4294901760
    %v951 = vsub.f32 %v105, %v950
    %v952 = vand.u32 %v951, 4294901760
    %v953 = vsub.f32 %v951, %v952
    %v954 = vand.u32 %v953, 4294901760
    %955 = vmatpush.msra.mxu0 %v954
    %v956 = vand.u32 %v101, 4294901760
    %v957 = vsub.f32 %v101, %v956
    %v958 = vand.u32 %v957, 4294901760
    %v959 = vsub.f32 %v957, %v958
    %v960 = vand.u32 %v959, 4294901760
    %961 = vmatpush.msra.mxu0 %v960
    %v962 = vand.u32 %v97, 4294901760
    %v963 = vsub.f32 %v97, %v962
    %v964 = vand.u32 %v963, 4294901760
    %v965 = vsub.f32 %v963, %v964
    %v966 = vand.u32 %v965, 4294901760
    %967 = vmatpush.msra.mxu0 %v966
    %v968 = vand.u32 %v93, 4294901760
    %v969 = vsub.f32 %v93, %v968
    %v970 = vand.u32 %v969, 4294901760
    %v971 = vsub.f32 %v969, %v970
    %v972 = vand.u32 %v971, 4294901760
    %973 = vmatpush.msra.mxu0 %v972
    %v974 = vand.u32 %v89, 4294901760
    %v975 = vsub.f32 %v89, %v974
    %v976 = vand.u32 %v975, 4294901760
    %v977 = vsub.f32 %v975, %v976
    %v978 = vand.u32 %v977, 4294901760
    %979 = vmatpush.msra.mxu0 %v978
    %v980 = vand.u32 %v85, 4294901760
    %v981 = vsub.f32 %v85, %v980
    %v982 = vand.u32 %v981, 4294901760
    %v983 = vsub.f32 %v981, %v982
    %v984 = vand.u32 %v983, 4294901760
    %985 = vmatpush.msra.mxu0 %v984
    %v986 = vand.u32 %v81, 4294901760
    %v987 = vsub.f32 %v81, %v986
    %v988 = vand.u32 %v987, 4294901760
    %v989 = vsub.f32 %v987, %v988
    %v990 = vand.u32 %v989, 4294901760
    %991 = vmatpush.msra.mxu0 %v990
    %v992 = vand.u32 %v77, 4294901760
    %v993 = vsub.f32 %v77, %v992
    %v994 = vand.u32 %v993, 4294901760
    %v995 = vsub.f32 %v993, %v994
    %v996 = vand.u32 %v995, 4294901760
    %997 = vmatpush.msra.mxu0 %v996
    %v998 = vand.u32 %v73, 4294901760
    %v999 = vsub.f32 %v73, %v998
    %v1000 = vand.u32 %v999, 4294901760
    %v1001 = vsub.f32 %v999, %v1000
    %v1002 = vand.u32 %v1001, 4294901760
    %1003 = vmatpush.msra.mxu0 %v1002
    %v1004 = vand.u32 %v69, 4294901760
    %v1005 = vsub.f32 %v69, %v1004
    %v1006 = vand.u32 %v1005, 4294901760
    %v1007 = vsub.f32 %v1005, %v1006
    %v1008 = vand.u32 %v1007, 4294901760
    %1009 = vmatpush.msra.mxu0 %v1008
    %v1010 = vand.u32 %v65, 4294901760
    %v1011 = vsub.f32 %v65, %v1010
    %v1012 = vand.u32 %v1011, 4294901760
    %v1013 = vsub.f32 %v1011, %v1012
    %v1014 = vand.u32 %v1013, 4294901760
    %1015 = vmatpush.msra.mxu0 %v1014
    %v1016 = vand.u32 %v193, 4294901760
    %1017 = vmatmul.f32.gmra.mxu0 %v1016
    %v1018 = vpop.f32.mrf.mxu0
    %v1019 = vadd.f32 %v918, %v1018
    %1020 = vdwg.mxu0
    %v1021 = vand.u32 %v125, 4294901760
    %v1022 = vsub.f32 %v125, %v1021
    %1023 = vmatpush.msra.mxu0 %v1022
    %v1024 = vand.u32 %v121, 4294901760
    %v1025 = vsub.f32 %v121, %v1024
    %1026 = vmatpush.msra.mxu0 %v1025
    %v1027 = vand.u32 %v117, 4294901760
    %v1028 = vsub.f32 %v117, %v1027
    %1029 = vmatpush.msra.mxu0 %v1028
    %v1030 = vand.u32 %v113, 4294901760
    %v1031 = vsub.f32 %v113, %v1030
    %1032 = vmatpush.msra.mxu0 %v1031
    %v1033 = vand.u32 %v109, 4294901760
    %v1034 = vsub.f32 %v109, %v1033
    %1035 = vmatpush.msra.mxu0 %v1034
    %v1036 = vand.u32 %v105, 4294901760
    %v1037 = vsub.f32 %v105, %v1036
    %1038 = vmatpush.msra.mxu0 %v1037
    %v1039 = vand.u32 %v101, 4294901760
    %v1040 = vsub.f32 %v101, %v1039
    %1041 = vmatpush.msra.mxu0 %v1040
    %v1042 = vand.u32 %v97, 4294901760
    %v1043 = vsub.f32 %v97, %v1042
    %1044 = vmatpush.msra.mxu0 %v1043
    %v1045 = vand.u32 %v93, 4294901760
    %v1046 = vsub.f32 %v93, %v1045
    %1047 = vmatpush.msra.mxu0 %v1046
    %v1048 = vand.u32 %v89, 4294901760
    %v1049 = vsub.f32 %v89, %v1048
    %1050 = vmatpush.msra.mxu0 %v1049
    %v1051 = vand.u32 %v85, 4294901760
    %v1052 = vsub.f32 %v85, %v1051
    %1053 = vmatpush.msra.mxu0 %v1052
    %v1054 = vand.u32 %v81, 4294901760
    %v1055 = vsub.f32 %v81, %v1054
    %1056 = vmatpush.msra.mxu0 %v1055
    %v1057 = vand.u32 %v77, 4294901760
    %v1058 = vsub.f32 %v77, %v1057
    %1059 = vmatpush.msra.mxu0 %v1058
    %v1060 = vand.u32 %v73, 4294901760
    %v1061 = vsub.f32 %v73, %v1060
    %1062 = vmatpush.msra.mxu0 %v1061
    %v1063 = vand.u32 %v69, 4294901760
    %v1064 = vsub.f32 %v69, %v1063
    %1065 = vmatpush.msra.mxu0 %v1064
    %v1066 = vand.u32 %v65, 4294901760
    %v1067 = vsub.f32 %v65, %v1066
    %1068 = vmatpush.msra.mxu0 %v1067
    %v1069 = vand.u32 %v193, 4294901760
    %v1070 = vsub.f32 %v193, %v1069
    %1071 = vmatmul.f32.gmra.mxu0 %v1070
    %v1072 = vpop.f32.mrf.mxu0
    %v1073 = vadd.f32 %v1019, %v1072
    %1074 = vdwg.mxu0
    %v1075 = vand.u32 %v125, 4294901760
    %1076 = vmatpush.msra.mxu0 %v1075
    %v1077 = vand.u32 %v121, 4294901760
    %1078 = vmatpush.msra.mxu0 %v1077
    %v1079 = vand.u32 %v117, 4294901760
    %1080 = vmatpush.msra.mxu0 %v1079
    %v1081 = vand.u32 %v113, 4294901760
    %1082 = vmatpush.msra.mxu0 %v1081
    %v1083 = vand.u32 %v109, 4294901760
    %1084 = vmatpush.msra.mxu0 %v1083
    %v1085 = vand.u32 %v105, 4294901760
    %1086 = vmatpush.msra.mxu0 %v1085
    %v1087 = vand.u32 %v101, 4294901760
    %1088 = vmatpush.msra.mxu0 %v1087
    %v1089 = vand.u32 %v97, 4294901760
    %1090 = vmatpush.msra.mxu0 %v1089
    %v1091 = vand.u32 %v93, 4294901760
    %1092 = vmatpush.msra.mxu0 %v1091
    %v1093 = vand.u32 %v89, 4294901760
    %1094 = vmatpush.msra.mxu0 %v1093
    %v1095 = vand.u32 %v85, 4294901760
    %1096 = vmatpush.msra.mxu0 %v1095
    %v1097 = vand.u32 %v81, 4294901760
    %1098 = vmatpush.msra.mxu0 %v1097
    %v1099 = vand.u32 %v77, 4294901760
    %1100 = vmatpush.msra.mxu0 %v1099
    %v1101 = vand.u32 %v73, 4294901760
    %1102 = vmatpush.msra.mxu0 %v1101
    %v1103 = vand.u32 %v69, 4294901760
    %1104 = vmatpush.msra.mxu0 %v1103
    %v1105 = vand.u32 %v65, 4294901760
    %1106 = vmatpush.msra.mxu0 %v1105
    %v1107 = vand.u32 %v193, 4294901760
    %v1108 = vsub.f32 %v193, %v1107
    %v1109 = vand.u32 %v1108, 4294901760
    %1110 = vmatmul.f32.gmra.mxu0 %v1109
    %v1111 = vpop.f32.mrf.mxu0
    %v1112 = vadd.f32 %v1073, %v1111
    %1113 = vdwg.mxu0
    %v1114 = vand.u32 %v125, 4294901760
    %v1115 = vsub.f32 %v125, %v1114
    %v1116 = vand.u32 %v1115, 4294901760
    %1117 = vmatpush.msra.mxu0 %v1116
    %v1118 = vand.u32 %v121, 4294901760
    %v1119 = vsub.f32 %v121, %v1118
    %v1120 = vand.u32 %v1119, 4294901760
    %1121 = vmatpush.msra.mxu0 %v1120
    %v1122 = vand.u32 %v117, 4294901760
    %v1123 = vsub.f32 %v117, %v1122
    %v1124 = vand.u32 %v1123, 4294901760
    %1125 = vmatpush.msra.mxu0 %v1124
    %v1126 = vand.u32 %v113, 4294901760
    %v1127 = vsub.f32 %v113, %v1126
    %v1128 = vand.u32 %v1127, 4294901760
    %1129 = vmatpush.msra.mxu0 %v1128
    %v1130 = vand.u32 %v109, 4294901760
    %v1131 = vsub.f32 %v109, %v1130
    %v1132 = vand.u32 %v1131, 4294901760
    %1133 = vmatpush.msra.mxu0 %v1132
    %v1134 = vand.u32 %v105, 4294901760
    %v1135 = vsub.f32 %v105, %v1134
    %v1136 = vand.u32 %v1135, 4294901760
    %1137 = vmatpush.msra.mxu0 %v1136
    %v1138 = vand.u32 %v101, 4294901760
    %v1139 = vsub.f32 %v101, %v1138
    %v1140 = vand.u32 %v1139, 4294901760
    %1141 = vmatpush.msra.mxu0 %v1140
    %v1142 = vand.u32 %v97, 4294901760
    %v1143 = vsub.f32 %v97, %v1142
    %v1144 = vand.u32 %v1143, 4294901760
    %1145 = vmatpush.msra.mxu0 %v1144
    %v1146 = vand.u32 %v93, 4294901760
    %v1147 = vsub.f32 %v93, %v1146
    %v1148 = vand.u32 %v1147, 4294901760
    %1149 = vmatpush.msra.mxu0 %v1148
    %v1150 = vand.u32 %v89, 4294901760
    %v1151 = vsub.f32 %v89, %v1150
    %v1152 = vand.u32 %v1151, 4294901760
    %1153 = vmatpush.msra.mxu0 %v1152
    %v1154 = vand.u32 %v85, 4294901760
    %v1155 = vsub.f32 %v85, %v1154
    %v1156 = vand.u32 %v1155, 4294901760
    %1157 = vmatpush.msra.mxu0 %v1156
    %v1158 = vand.u32 %v81, 4294901760
    %v1159 = vsub.f32 %v81, %v1158
    %v1160 = vand.u32 %v1159, 4294901760
    %1161 = vmatpush.msra.mxu0 %v1160
    %v1162 = vand.u32 %v77, 4294901760
    %v1163 = vsub.f32 %v77, %v1162
    %v1164 = vand.u32 %v1163, 4294901760
    %1165 = vmatpush.msra.mxu0 %v1164
    %v1166 = vand.u32 %v73, 4294901760
    %v1167 = vsub.f32 %v73, %v1166
    %v1168 = vand.u32 %v1167, 4294901760
    %1169 = vmatpush.msra.mxu0 %v1168
    %v1170 = vand.u32 %v69, 4294901760
    %v1171 = vsub.f32 %v69, %v1170
    %v1172 = vand.u32 %v1171, 4294901760
    %1173 = vmatpush.msra.mxu0 %v1172
    %v1174 = vand.u32 %v65, 4294901760
    %v1175 = vsub.f32 %v65, %v1174
    %v1176 = vand.u32 %v1175, 4294901760
    %1177 = vmatpush.msra.mxu0 %v1176
    %v1178 = vand.u32 %v193, 4294901760
    %1179 = vmatmul.f32.gmra.mxu0 %v1178
    %v1180 = vpop.f32.mrf.mxu0
    %v1181 = vadd.f32 %v1112, %v1180
    %1182 = vdwg.mxu0
    %v1183 = vand.u32 %v125, 4294901760
    %1184 = vmatpush.msra.mxu0 %v1183
    %v1185 = vand.u32 %v121, 4294901760
    %1186 = vmatpush.msra.mxu0 %v1185
    %v1187 = vand.u32 %v117, 4294901760
    %1188 = vmatpush.msra.mxu0 %v1187
    %v1189 = vand.u32 %v113, 4294901760
    %1190 = vmatpush.msra.mxu0 %v1189
    %v1191 = vand.u32 %v109, 4294901760
    %1192 = vmatpush.msra.mxu0 %v1191
    %v1193 = vand.u32 %v105, 4294901760
    %1194 = vmatpush.msra.mxu0 %v1193
    %v1195 = vand.u32 %v101, 4294901760
    %1196 = vmatpush.msra.mxu0 %v1195
    %v1197 = vand.u32 %v97, 4294901760
    %1198 = vmatpush.msra.mxu0 %v1197
    %v1199 = vand.u32 %v93, 4294901760
    %1200 = vmatpush.msra.mxu0 %v1199
    %v1201 = vand.u32 %v89, 4294901760
    %1202 = vmatpush.msra.mxu0 %v1201
    %v1203 = vand.u32 %v85, 4294901760
    %1204 = vmatpush.msra.mxu0 %v1203
    %v1205 = vand.u32 %v81, 4294901760
    %1206 = vmatpush.msra.mxu0 %v1205
    %v1207 = vand.u32 %v77, 4294901760
    %1208 = vmatpush.msra.mxu0 %v1207
    %v1209 = vand.u32 %v73, 4294901760
    %1210 = vmatpush.msra.mxu0 %v1209
    %v1211 = vand.u32 %v69, 4294901760
    %1212 = vmatpush.msra.mxu0 %v1211
    %v1213 = vand.u32 %v65, 4294901760
    %1214 = vmatpush.msra.mxu0 %v1213
    %v1215 = vand.u32 %v193, 4294901760
    %1216 = vmatmul.f32.gmra.mxu0 %v1215
    %v1217 = vpop.f32.mrf.mxu0
    %v1218 = vadd.f32 %v1181, %v1217
    %1219 = vdwg.mxu0
    %v1220 = vand.u32 %v189, 4294901760
    %1221 = vmatpush.msra.mxu0 %v1220
    %v1222 = vand.u32 %v185, 4294901760
    %1223 = vmatpush.msra.mxu0 %v1222
    %v1224 = vand.u32 %v181, 4294901760
    %1225 = vmatpush.msra.mxu0 %v1224
    %v1226 = vand.u32 %v177, 4294901760
    %1227 = vmatpush.msra.mxu0 %v1226
    %v1228 = vand.u32 %v173, 4294901760
    %1229 = vmatpush.msra.mxu0 %v1228
    %v1230 = vand.u32 %v169, 4294901760
    %1231 = vmatpush.msra.mxu0 %v1230
    %v1232 = vand.u32 %v165, 4294901760
    %1233 = vmatpush.msra.mxu0 %v1232
    %v1234 = vand.u32 %v161, 4294901760
    %1235 = vmatpush.msra.mxu0 %v1234
    %v1236 = vand.u32 %v157, 4294901760
    %1237 = vmatpush.msra.mxu0 %v1236
    %v1238 = vand.u32 %v153, 4294901760
    %1239 = vmatpush.msra.mxu0 %v1238
    %v1240 = vand.u32 %v149, 4294901760
    %1241 = vmatpush.msra.mxu0 %v1240
    %v1242 = vand.u32 %v145, 4294901760
    %1243 = vmatpush.msra.mxu0 %v1242
    %v1244 = vand.u32 %v141, 4294901760
    %1245 = vmatpush.msra.mxu0 %v1244
    %v1246 = vand.u32 %v137, 4294901760
    %1247 = vmatpush.msra.mxu0 %v1246
    %v1248 = vand.u32 %v133, 4294901760
    %1249 = vmatpush.msra.mxu0 %v1248
    %v1250 = vand.u32 %v129, 4294901760
    %1251 = vmatpush.msra.mxu0 %v1250
    %v1252 = vand.u32 %v194, 4294901760
    %v1253 = vsub.f32 %v194, %v1252
    %v1254 = vand.u32 %v1253, 4294901760
    %v1255 = vsub.f32 %v1253, %v1254
    %v1256 = vand.u32 %v1255, 4294901760
    %1257 = vmatmul.f32.gmra.mxu0 %v1256
    %v1258 = vpop.f32.mrf.mxu0
    %v1259 = vadd.f32 %v1218, %v1258
    %1260 = vdwg.mxu0
    %v1261 = vand.u32 %v189, 4294901760
    %v1262 = vsub.f32 %v189, %v1261
    %v1263 = vand.u32 %v1262, 4294901760
    %v1264 = vsub.f32 %v1262, %v1263
    %v1265 = vand.u32 %v1264, 4294901760
    %1266 = vmatpush.msra.mxu0 %v1265
    %v1267 = vand.u32 %v185, 4294901760
    %v1268 = vsub.f32 %v185, %v1267
    %v1269 = vand.u32 %v1268, 4294901760
    %v1270 = vsub.f32 %v1268, %v1269
    %v1271 = vand.u32 %v1270, 4294901760
    %1272 = vmatpush.msra.mxu0 %v1271
    %v1273 = vand.u32 %v181, 4294901760
    %v1274 = vsub.f32 %v181, %v1273
    %v1275 = vand.u32 %v1274, 4294901760
    %v1276 = vsub.f32 %v1274, %v1275
    %v1277 = vand.u32 %v1276, 4294901760
    %1278 = vmatpush.msra.mxu0 %v1277
    %v1279 = vand.u32 %v177, 4294901760
    %v1280 = vsub.f32 %v177, %v1279
    %v1281 = vand.u32 %v1280, 4294901760
    %v1282 = vsub.f32 %v1280, %v1281
    %v1283 = vand.u32 %v1282, 4294901760
    %1284 = vmatpush.msra.mxu0 %v1283
    %v1285 = vand.u32 %v173, 4294901760
    %v1286 = vsub.f32 %v173, %v1285
    %v1287 = vand.u32 %v1286, 4294901760
    %v1288 = vsub.f32 %v1286, %v1287
    %v1289 = vand.u32 %v1288, 4294901760
    %1290 = vmatpush.msra.mxu0 %v1289
    %v1291 = vand.u32 %v169, 4294901760
    %v1292 = vsub.f32 %v169, %v1291
    %v1293 = vand.u32 %v1292, 4294901760
    %v1294 = vsub.f32 %v1292, %v1293
    %v1295 = vand.u32 %v1294, 4294901760
    %1296 = vmatpush.msra.mxu0 %v1295
    %v1297 = vand.u32 %v165, 4294901760
    %v1298 = vsub.f32 %v165, %v1297
    %v1299 = vand.u32 %v1298, 4294901760
    %v1300 = vsub.f32 %v1298, %v1299
    %v1301 = vand.u32 %v1300, 4294901760
    %1302 = vmatpush.msra.mxu0 %v1301
    %v1303 = vand.u32 %v161, 4294901760
    %v1304 = vsub.f32 %v161, %v1303
    %v1305 = vand.u32 %v1304, 4294901760
    %v1306 = vsub.f32 %v1304, %v1305
    %v1307 = vand.u32 %v1306, 4294901760
    %1308 = vmatpush.msra.mxu0 %v1307
    %v1309 = vand.u32 %v157, 4294901760
    %v1310 = vsub.f32 %v157, %v1309
    %v1311 = vand.u32 %v1310, 4294901760
    %v1312 = vsub.f32 %v1310, %v1311
    %v1313 = vand.u32 %v1312, 4294901760
    %1314 = vmatpush.msra.mxu0 %v1313
    %v1315 = vand.u32 %v153, 4294901760
    %v1316 = vsub.f32 %v153, %v1315
    %v1317 = vand.u32 %v1316, 4294901760
    %v1318 = vsub.f32 %v1316, %v1317
    %v1319 = vand.u32 %v1318, 4294901760
    %1320 = vmatpush.msra.mxu0 %v1319
    %v1321 = vand.u32 %v149, 4294901760
    %v1322 = vsub.f32 %v149, %v1321
    %v1323 = vand.u32 %v1322, 4294901760
    %v1324 = vsub.f32 %v1322, %v1323
    %v1325 = vand.u32 %v1324, 4294901760
    %1326 = vmatpush.msra.mxu0 %v1325
    %v1327 = vand.u32 %v145, 4294901760
    %v1328 = vsub.f32 %v145, %v1327
    %v1329 = vand.u32 %v1328, 4294901760
    %v1330 = vsub.f32 %v1328, %v1329
    %v1331 = vand.u32 %v1330, 4294901760
    %1332 = vmatpush.msra.mxu0 %v1331
    %v1333 = vand.u32 %v141, 4294901760
    %v1334 = vsub.f32 %v141, %v1333
    %v1335 = vand.u32 %v1334, 4294901760
    %v1336 = vsub.f32 %v1334, %v1335
    %v1337 = vand.u32 %v1336, 4294901760
    %1338 = vmatpush.msra.mxu0 %v1337
    %v1339 = vand.u32 %v137, 4294901760
    %v1340 = vsub.f32 %v137, %v1339
    %v1341 = vand.u32 %v1340, 4294901760
    %v1342 = vsub.f32 %v1340, %v1341
    %v1343 = vand.u32 %v1342, 4294901760
    %1344 = vmatpush.msra.mxu0 %v1343
    %v1345 = vand.u32 %v133, 4294901760
    %v1346 = vsub.f32 %v133, %v1345
    %v1347 = vand.u32 %v1346, 4294901760
    %v1348 = vsub.f32 %v1346, %v1347
    %v1349 = vand.u32 %v1348, 4294901760
    %1350 = vmatpush.msra.mxu0 %v1349
    %v1351 = vand.u32 %v129, 4294901760
    %v1352 = vsub.f32 %v129, %v1351
    %v1353 = vand.u32 %v1352, 4294901760
    %v1354 = vsub.f32 %v1352, %v1353
    %v1355 = vand.u32 %v1354, 4294901760
    %1356 = vmatpush.msra.mxu0 %v1355
    %v1357 = vand.u32 %v194, 4294901760
    %1358 = vmatmul.f32.gmra.mxu0 %v1357
    %v1359 = vpop.f32.mrf.mxu0
    %v1360 = vadd.f32 %v1259, %v1359
    %1361 = vdwg.mxu0
    %v1362 = vand.u32 %v189, 4294901760
    %v1363 = vsub.f32 %v189, %v1362
    %1364 = vmatpush.msra.mxu0 %v1363
    %v1365 = vand.u32 %v185, 4294901760
    %v1366 = vsub.f32 %v185, %v1365
    %1367 = vmatpush.msra.mxu0 %v1366
    %v1368 = vand.u32 %v181, 4294901760
    %v1369 = vsub.f32 %v181, %v1368
    %1370 = vmatpush.msra.mxu0 %v1369
    %v1371 = vand.u32 %v177, 4294901760
    %v1372 = vsub.f32 %v177, %v1371
    %1373 = vmatpush.msra.mxu0 %v1372
    %v1374 = vand.u32 %v173, 4294901760
    %v1375 = vsub.f32 %v173, %v1374
    %1376 = vmatpush.msra.mxu0 %v1375
    %v1377 = vand.u32 %v169, 4294901760
    %v1378 = vsub.f32 %v169, %v1377
    %1379 = vmatpush.msra.mxu0 %v1378
    %v1380 = vand.u32 %v165, 4294901760
    %v1381 = vsub.f32 %v165, %v1380
    %1382 = vmatpush.msra.mxu0 %v1381
    %v1383 = vand.u32 %v161, 4294901760
    %v1384 = vsub.f32 %v161, %v1383
    %1385 = vmatpush.msra.mxu0 %v1384
    %v1386 = vand.u32 %v157, 4294901760
    %v1387 = vsub.f32 %v157, %v1386
    %1388 = vmatpush.msra.mxu0 %v1387
    %v1389 = vand.u32 %v153, 4294901760
    %v1390 = vsub.f32 %v153, %v1389
    %1391 = vmatpush.msra.mxu0 %v1390
    %v1392 = vand.u32 %v149, 4294901760
    %v1393 = vsub.f32 %v149, %v1392
    %1394 = vmatpush.msra.mxu0 %v1393
    %v1395 = vand.u32 %v145, 4294901760
    %v1396 = vsub.f32 %v145, %v1395
    %1397 = vmatpush.msra.mxu0 %v1396
    %v1398 = vand.u32 %v141, 4294901760
    %v1399 = vsub.f32 %v141, %v1398
    %1400 = vmatpush.msra.mxu0 %v1399
    %v1401 = vand.u32 %v137, 4294901760
    %v1402 = vsub.f32 %v137, %v1401
    %1403 = vmatpush.msra.mxu0 %v1402
    %v1404 = vand.u32 %v133, 4294901760
    %v1405 = vsub.f32 %v133, %v1404
    %1406 = vmatpush.msra.mxu0 %v1405
    %v1407 = vand.u32 %v129, 4294901760
    %v1408 = vsub.f32 %v129, %v1407
    %1409 = vmatpush.msra.mxu0 %v1408
    %v1410 = vand.u32 %v194, 4294901760
    %v1411 = vsub.f32 %v194, %v1410
    %1412 = vmatmul.f32.gmra.mxu0 %v1411
    %v1413 = vpop.f32.mrf.mxu0
    %v1414 = vadd.f32 %v1360, %v1413
    %1415 = vdwg.mxu0
    %v1416 = vand.u32 %v189, 4294901760
    %1417 = vmatpush.msra.mxu0 %v1416
    %v1418 = vand.u32 %v185, 4294901760
    %1419 = vmatpush.msra.mxu0 %v1418
    %v1420 = vand.u32 %v181, 4294901760
    %1421 = vmatpush.msra.mxu0 %v1420
    %v1422 = vand.u32 %v177, 4294901760
    %1423 = vmatpush.msra.mxu0 %v1422
    %v1424 = vand.u32 %v173, 4294901760
    %1425 = vmatpush.msra.mxu0 %v1424
    %v1426 = vand.u32 %v169, 4294901760
    %1427 = vmatpush.msra.mxu0 %v1426
    %v1428 = vand.u32 %v165, 4294901760
    %1429 = vmatpush.msra.mxu0 %v1428
    %v1430 = vand.u32 %v161, 4294901760
    %1431 = vmatpush.msra.mxu0 %v1430
    %v1432 = vand.u32 %v157, 4294901760
    %1433 = vmatpush.msra.mxu0 %v1432
    %v1434 = vand.u32 %v153, 4294901760
    %1435 = vmatpush.msra.mxu0 %v1434
    %v1436 = vand.u32 %v149, 4294901760
    %1437 = vmatpush.msra.mxu0 %v1436
    %v1438 = vand.u32 %v145, 4294901760
    %1439 = vmatpush.msra.mxu0 %v1438
    %v1440 = vand.u32 %v141, 4294901760
    %1441 = vmatpush.msra.mxu0 %v1440
    %v1442 = vand.u32 %v137, 4294901760
    %1443 = vmatpush.msra.mxu0 %v1442
    %v1444 = vand.u32 %v133, 4294901760
    %1445 = vmatpush.msra.mxu0 %v1444
    %v1446 = vand.u32 %v129, 4294901760
    %1447 = vmatpush.msra.mxu0 %v1446
    %v1448 = vand.u32 %v194, 4294901760
    %v1449 = vsub.f32 %v194, %v1448
    %v1450 = vand.u32 %v1449, 4294901760
    %1451 = vmatmul.f32.gmra.mxu0 %v1450
    %v1452 = vpop.f32.mrf.mxu0
    %v1453 = vadd.f32 %v1414, %v1452
    %1454 = vdwg.mxu0
    %v1455 = vand.u32 %v189, 4294901760
    %v1456 = vsub.f32 %v189, %v1455
    %v1457 = vand.u32 %v1456, 4294901760
    %1458 = vmatpush.msra.mxu0 %v1457
    %v1459 = vand.u32 %v185, 4294901760
    %v1460 = vsub.f32 %v185, %v1459
    %v1461 = vand.u32 %v1460, 4294901760
    %1462 = vmatpush.msra.mxu0 %v1461
    %v1463 = vand.u32 %v181, 4294901760
    %v1464 = vsub.f32 %v181, %v1463
    %v1465 = vand.u32 %v1464, 4294901760
    %1466 = vmatpush.msra.mxu0 %v1465
    %v1467 = vand.u32 %v177, 4294901760
    %v1468 = vsub.f32 %v177, %v1467
    %v1469 = vand.u32 %v1468, 4294901760
    %1470 = vmatpush.msra.mxu0 %v1469
    %v1471 = vand.u32 %v173, 4294901760
    %v1472 = vsub.f32 %v173, %v1471
    %v1473 = vand.u32 %v1472, 4294901760
    %1474 = vmatpush.msra.mxu0 %v1473
    %v1475 = vand.u32 %v169, 4294901760
    %v1476 = vsub.f32 %v169, %v1475
    %v1477 = vand.u32 %v1476, 4294901760
    %1478 = vmatpush.msra.mxu0 %v1477
    %v1479 = vand.u32 %v165, 4294901760
    %v1480 = vsub.f32 %v165, %v1479
    %v1481 = vand.u32 %v1480, 4294901760
    %1482 = vmatpush.msra.mxu0 %v1481
    %v1483 = vand.u32 %v161, 4294901760
    %v1484 = vsub.f32 %v161, %v1483
    %v1485 = vand.u32 %v1484, 4294901760
    %1486 = vmatpush.msra.mxu0 %v1485
    %v1487 = vand.u32 %v157, 4294901760
    %v1488 = vsub.f32 %v157, %v1487
    %v1489 = vand.u32 %v1488, 4294901760
    %1490 = vmatpush.msra.mxu0 %v1489
    %v1491 = vand.u32 %v153, 4294901760
    %v1492 = vsub.f32 %v153, %v1491
    %v1493 = vand.u32 %v1492, 4294901760
    %1494 = vmatpush.msra.mxu0 %v1493
    %v1495 = vand.u32 %v149, 4294901760
    %v1496 = vsub.f32 %v149, %v1495
    %v1497 = vand.u32 %v1496, 4294901760
    %1498 = vmatpush.msra.mxu0 %v1497
    %v1499 = vand.u32 %v145, 4294901760
    %v1500 = vsub.f32 %v145, %v1499
    %v1501 = vand.u32 %v1500, 4294901760
    %1502 = vmatpush.msra.mxu0 %v1501
    %v1503 = vand.u32 %v141, 4294901760
    %v1504 = vsub.f32 %v141, %v1503
    %v1505 = vand.u32 %v1504, 4294901760
    %1506 = vmatpush.msra.mxu0 %v1505
    %v1507 = vand.u32 %v137, 4294901760
    %v1508 = vsub.f32 %v137, %v1507
    %v1509 = vand.u32 %v1508, 4294901760
    %1510 = vmatpush.msra.mxu0 %v1509
    %v1511 = vand.u32 %v133, 4294901760
    %v1512 = vsub.f32 %v133, %v1511
    %v1513 = vand.u32 %v1512, 4294901760
    %1514 = vmatpush.msra.mxu0 %v1513
    %v1515 = vand.u32 %v129, 4294901760
    %v1516 = vsub.f32 %v129, %v1515
    %v1517 = vand.u32 %v1516, 4294901760
    %1518 = vmatpush.msra.mxu0 %v1517
    %v1519 = vand.u32 %v194, 4294901760
    %1520 = vmatmul.f32.gmra.mxu0 %v1519
    %v1521 = vpop.f32.mrf.mxu0
    %v1522 = vadd.f32 %v1453, %v1521
    %1523 = vdwg.mxu0
    %v1524 = vand.u32 %v189, 4294901760
    %1525 = vmatpush.msra.mxu0 %v1524
    %v1526 = vand.u32 %v185, 4294901760
    %1527 = vmatpush.msra.mxu0 %v1526
    %v1528 = vand.u32 %v181, 4294901760
    %1529 = vmatpush.msra.mxu0 %v1528
    %v1530 = vand.u32 %v177, 4294901760
    %1531 = vmatpush.msra.mxu0 %v1530
    %v1532 = vand.u32 %v173, 4294901760
    %1533 = vmatpush.msra.mxu0 %v1532
    %v1534 = vand.u32 %v169, 4294901760
    %1535 = vmatpush.msra.mxu0 %v1534
    %v1536 = vand.u32 %v165, 4294901760
    %1537 = vmatpush.msra.mxu0 %v1536
    %v1538 = vand.u32 %v161, 4294901760
    %1539 = vmatpush.msra.mxu0 %v1538
    %v1540 = vand.u32 %v157, 4294901760
    %1541 = vmatpush.msra.mxu0 %v1540
    %v1542 = vand.u32 %v153, 4294901760
    %1543 = vmatpush.msra.mxu0 %v1542
    %v1544 = vand.u32 %v149, 4294901760
    %1545 = vmatpush.msra.mxu0 %v1544
    %v1546 = vand.u32 %v145, 4294901760
    %1547 = vmatpush.msra.mxu0 %v1546
    %v1548 = vand.u32 %v141, 4294901760
    %1549 = vmatpush.msra.mxu0 %v1548
    %v1550 = vand.u32 %v137, 4294901760
    %1551 = vmatpush.msra.mxu0 %v1550
    %v1552 = vand.u32 %v133, 4294901760
    %1553 = vmatpush.msra.mxu0 %v1552
    %v1554 = vand.u32 %v129, 4294901760
    %1555 = vmatpush.msra.mxu0 %v1554
    %v1556 = vand.u32 %v194, 4294901760
    %1557 = vmatmul.f32.gmra.mxu0 %v1556
    %v1558 = vpop.f32.mrf.mxu0
    %v1559 = vadd.f32 %v1522, %v1558
    %1560 = vdwg.mxu0
    %v1561 = vand.u32 %v126, 4294901760
    %1562 = vmatpush.msra.mxu0 %v1561
    %v1563 = vand.u32 %v122, 4294901760
    %1564 = vmatpush.msra.mxu0 %v1563
    %v1565 = vand.u32 %v118, 4294901760
    %1566 = vmatpush.msra.mxu0 %v1565
    %v1567 = vand.u32 %v114, 4294901760
    %1568 = vmatpush.msra.mxu0 %v1567
    %v1569 = vand.u32 %v110, 4294901760
    %1570 = vmatpush.msra.mxu0 %v1569
    %v1571 = vand.u32 %v106, 4294901760
    %1572 = vmatpush.msra.mxu0 %v1571
    %v1573 = vand.u32 %v102, 4294901760
    %1574 = vmatpush.msra.mxu0 %v1573
    %v1575 = vand.u32 %v98, 4294901760
    %1576 = vmatpush.msra.mxu0 %v1575
    %v1577 = vand.u32 %v94, 4294901760
    %1578 = vmatpush.msra.mxu0 %v1577
    %v1579 = vand.u32 %v90, 4294901760
    %1580 = vmatpush.msra.mxu0 %v1579
    %v1581 = vand.u32 %v86, 4294901760
    %1582 = vmatpush.msra.mxu0 %v1581
    %v1583 = vand.u32 %v82, 4294901760
    %1584 = vmatpush.msra.mxu0 %v1583
    %v1585 = vand.u32 %v78, 4294901760
    %1586 = vmatpush.msra.mxu0 %v1585
    %v1587 = vand.u32 %v74, 4294901760
    %1588 = vmatpush.msra.mxu0 %v1587
    %v1589 = vand.u32 %v70, 4294901760
    %1590 = vmatpush.msra.mxu0 %v1589
    %v1591 = vand.u32 %v66, 4294901760
    %1592 = vmatpush.msra.mxu0 %v1591
    %v1593 = vand.u32 %v193, 4294901760
    %v1594 = vsub.f32 %v193, %v1593
    %v1595 = vand.u32 %v1594, 4294901760
    %v1596 = vsub.f32 %v1594, %v1595
    %v1597 = vand.u32 %v1596, 4294901760
    %1598 = vmatmul.f32.gmra.mxu0 %v1597
    %v1599 = vpop.f32.mrf.mxu0
    %v1600 = vadd.f32 0.0, %v1599
    %1601 = vdwg.mxu0
    %v1602 = vand.u32 %v126, 4294901760
    %v1603 = vsub.f32 %v126, %v1602
    %v1604 = vand.u32 %v1603, 4294901760
    %v1605 = vsub.f32 %v1603, %v1604
    %v1606 = vand.u32 %v1605, 4294901760
    %1607 = vmatpush.msra.mxu0 %v1606
    %v1608 = vand.u32 %v122, 4294901760
    %v1609 = vsub.f32 %v122, %v1608
    %v1610 = vand.u32 %v1609, 4294901760
    %v1611 = vsub.f32 %v1609, %v1610
    %v1612 = vand.u32 %v1611, 4294901760
    %1613 = vmatpush.msra.mxu0 %v1612
    %v1614 = vand.u32 %v118, 4294901760
    %v1615 = vsub.f32 %v118, %v1614
    %v1616 = vand.u32 %v1615, 4294901760
    %v1617 = vsub.f32 %v1615, %v1616
    %v1618 = vand.u32 %v1617, 4294901760
    %1619 = vmatpush.msra.mxu0 %v1618
    %v1620 = vand.u32 %v114, 4294901760
    %v1621 = vsub.f32 %v114, %v1620
    %v1622 = vand.u32 %v1621, 4294901760
    %v1623 = vsub.f32 %v1621, %v1622
    %v1624 = vand.u32 %v1623, 4294901760
    %1625 = vmatpush.msra.mxu0 %v1624
    %v1626 = vand.u32 %v110, 4294901760
    %v1627 = vsub.f32 %v110, %v1626
    %v1628 = vand.u32 %v1627, 4294901760
    %v1629 = vsub.f32 %v1627, %v1628
    %v1630 = vand.u32 %v1629, 4294901760
    %1631 = vmatpush.msra.mxu0 %v1630
    %v1632 = vand.u32 %v106, 4294901760
    %v1633 = vsub.f32 %v106, %v1632
    %v1634 = vand.u32 %v1633, 4294901760
    %v1635 = vsub.f32 %v1633, %v1634
    %v1636 = vand.u32 %v1635, 4294901760
    %1637 = vmatpush.msra.mxu0 %v1636
    %v1638 = vand.u32 %v102, 4294901760
    %v1639 = vsub.f32 %v102, %v1638
    %v1640 = vand.u32 %v1639, 4294901760
    %v1641 = vsub.f32 %v1639, %v1640
    %v1642 = vand.u32 %v1641, 4294901760
    %1643 = vmatpush.msra.mxu0 %v1642
    %v1644 = vand.u32 %v98, 4294901760
    %v1645 = vsub.f32 %v98, %v1644
    %v1646 = vand.u32 %v1645, 4294901760
    %v1647 = vsub.f32 %v1645, %v1646
    %v1648 = vand.u32 %v1647, 4294901760
    %1649 = vmatpush.msra.mxu0 %v1648
    %v1650 = vand.u32 %v94, 4294901760
    %v1651 = vsub.f32 %v94, %v1650
    %v1652 = vand.u32 %v1651, 4294901760
    %v1653 = vsub.f32 %v1651, %v1652
    %v1654 = vand.u32 %v1653, 4294901760
    %1655 = vmatpush.msra.mxu0 %v1654
    %v1656 = vand.u32 %v90, 4294901760
    %v1657 = vsub.f32 %v90, %v1656
    %v1658 = vand.u32 %v1657, 4294901760
    %v1659 = vsub.f32 %v1657, %v1658
    %v1660 = vand.u32 %v1659, 4294901760
    %1661 = vmatpush.msra.mxu0 %v1660
    %v1662 = vand.u32 %v86, 4294901760
    %v1663 = vsub.f32 %v86, %v1662
    %v1664 = vand.u32 %v1663, 4294901760
    %v1665 = vsub.f32 %v1663, %v1664
    %v1666 = vand.u32 %v1665, 4294901760
    %1667 = vmatpush.msra.mxu0 %v1666
    %v1668 = vand.u32 %v82, 4294901760
    %v1669 = vsub.f32 %v82, %v1668
    %v1670 = vand.u32 %v1669, 4294901760
    %v1671 = vsub.f32 %v1669, %v1670
    %v1672 = vand.u32 %v1671, 4294901760
    %1673 = vmatpush.msra.mxu0 %v1672
    %v1674 = vand.u32 %v78, 4294901760
    %v1675 = vsub.f32 %v78, %v1674
    %v1676 = vand.u32 %v1675, 4294901760
    %v1677 = vsub.f32 %v1675, %v1676
    %v1678 = vand.u32 %v1677, 4294901760
    %1679 = vmatpush.msra.mxu0 %v1678
    %v1680 = vand.u32 %v74, 4294901760
    %v1681 = vsub.f32 %v74, %v1680
    %v1682 = vand.u32 %v1681, 4294901760
    %v1683 = vsub.f32 %v1681, %v1682
    %v1684 = vand.u32 %v1683, 4294901760
    %1685 = vmatpush.msra.mxu0 %v1684
    %v1686 = vand.u32 %v70, 4294901760
    %v1687 = vsub.f32 %v70, %v1686
    %v1688 = vand.u32 %v1687, 4294901760
    %v1689 = vsub.f32 %v1687, %v1688
    %v1690 = vand.u32 %v1689, 4294901760
    %1691 = vmatpush.msra.mxu0 %v1690
    %v1692 = vand.u32 %v66, 4294901760
    %v1693 = vsub.f32 %v66, %v1692
    %v1694 = vand.u32 %v1693, 4294901760
    %v1695 = vsub.f32 %v1693, %v1694
    %v1696 = vand.u32 %v1695, 4294901760
    %1697 = vmatpush.msra.mxu0 %v1696
    %v1698 = vand.u32 %v193, 4294901760
    %1699 = vmatmul.f32.gmra.mxu0 %v1698
    %v1700 = vpop.f32.mrf.mxu0
    %v1701 = vadd.f32 %v1600, %v1700
    %1702 = vdwg.mxu0
    %v1703 = vand.u32 %v126, 4294901760
    %v1704 = vsub.f32 %v126, %v1703
    %1705 = vmatpush.msra.mxu0 %v1704
    %v1706 = vand.u32 %v122, 4294901760
    %v1707 = vsub.f32 %v122, %v1706
    %1708 = vmatpush.msra.mxu0 %v1707
    %v1709 = vand.u32 %v118, 4294901760
    %v1710 = vsub.f32 %v118, %v1709
    %1711 = vmatpush.msra.mxu0 %v1710
    %v1712 = vand.u32 %v114, 4294901760
    %v1713 = vsub.f32 %v114, %v1712
    %1714 = vmatpush.msra.mxu0 %v1713
    %v1715 = vand.u32 %v110, 4294901760
    %v1716 = vsub.f32 %v110, %v1715
    %1717 = vmatpush.msra.mxu0 %v1716
    %v1718 = vand.u32 %v106, 4294901760
    %v1719 = vsub.f32 %v106, %v1718
    %1720 = vmatpush.msra.mxu0 %v1719
    %v1721 = vand.u32 %v102, 4294901760
    %v1722 = vsub.f32 %v102, %v1721
    %1723 = vmatpush.msra.mxu0 %v1722
    %v1724 = vand.u32 %v98, 4294901760
    %v1725 = vsub.f32 %v98, %v1724
    %1726 = vmatpush.msra.mxu0 %v1725
    %v1727 = vand.u32 %v94, 4294901760
    %v1728 = vsub.f32 %v94, %v1727
    %1729 = vmatpush.msra.mxu0 %v1728
    %v1730 = vand.u32 %v90, 4294901760
    %v1731 = vsub.f32 %v90, %v1730
    %1732 = vmatpush.msra.mxu0 %v1731
    %v1733 = vand.u32 %v86, 4294901760
    %v1734 = vsub.f32 %v86, %v1733
    %1735 = vmatpush.msra.mxu0 %v1734
    %v1736 = vand.u32 %v82, 4294901760
    %v1737 = vsub.f32 %v82, %v1736
    %1738 = vmatpush.msra.mxu0 %v1737
    %v1739 = vand.u32 %v78, 4294901760
    %v1740 = vsub.f32 %v78, %v1739
    %1741 = vmatpush.msra.mxu0 %v1740
    %v1742 = vand.u32 %v74, 4294901760
    %v1743 = vsub.f32 %v74, %v1742
    %1744 = vmatpush.msra.mxu0 %v1743
    %v1745 = vand.u32 %v70, 4294901760
    %v1746 = vsub.f32 %v70, %v1745
    %1747 = vmatpush.msra.mxu0 %v1746
    %v1748 = vand.u32 %v66, 4294901760
    %v1749 = vsub.f32 %v66, %v1748
    %1750 = vmatpush.msra.mxu0 %v1749
    %v1751 = vand.u32 %v193, 4294901760
    %v1752 = vsub.f32 %v193, %v1751
    %1753 = vmatmul.f32.gmra.mxu0 %v1752
    %v1754 = vpop.f32.mrf.mxu0
    %v1755 = vadd.f32 %v1701, %v1754
    %1756 = vdwg.mxu0
    %v1757 = vand.u32 %v126, 4294901760
    %1758 = vmatpush.msra.mxu0 %v1757
    %v1759 = vand.u32 %v122, 4294901760
    %1760 = vmatpush.msra.mxu0 %v1759
    %v1761 = vand.u32 %v118, 4294901760
    %1762 = vmatpush.msra.mxu0 %v1761
    %v1763 = vand.u32 %v114, 4294901760
    %1764 = vmatpush.msra.mxu0 %v1763
    %v1765 = vand.u32 %v110, 4294901760
    %1766 = vmatpush.msra.mxu0 %v1765
    %v1767 = vand.u32 %v106, 4294901760
    %1768 = vmatpush.msra.mxu0 %v1767
    %v1769 = vand.u32 %v102, 4294901760
    %1770 = vmatpush.msra.mxu0 %v1769
    %v1771 = vand.u32 %v98, 4294901760
    %1772 = vmatpush.msra.mxu0 %v1771
    %v1773 = vand.u32 %v94, 4294901760
    %1774 = vmatpush.msra.mxu0 %v1773
    %v1775 = vand.u32 %v90, 4294901760
    %1776 = vmatpush.msra.mxu0 %v1775
    %v1777 = vand.u32 %v86, 4294901760
    %1778 = vmatpush.msra.mxu0 %v1777
    %v1779 = vand.u32 %v82, 4294901760
    %1780 = vmatpush.msra.mxu0 %v1779
    %v1781 = vand.u32 %v78, 4294901760
    %1782 = vmatpush.msra.mxu0 %v1781
    %v1783 = vand.u32 %v74, 4294901760
    %1784 = vmatpush.msra.mxu0 %v1783
    %v1785 = vand.u32 %v70, 4294901760
    %1786 = vmatpush.msra.mxu0 %v1785
    %v1787 = vand.u32 %v66, 4294901760
    %1788 = vmatpush.msra.mxu0 %v1787
    %v1789 = vand.u32 %v193, 4294901760
    %v1790 = vsub.f32 %v193, %v1789
    %v1791 = vand.u32 %v1790, 4294901760
    %1792 = vmatmul.f32.gmra.mxu0 %v1791
    %v1793 = vpop.f32.mrf.mxu0
    %v1794 = vadd.f32 %v1755, %v1793
    %1795 = vdwg.mxu0
    %v1796 = vand.u32 %v126, 4294901760
    %v1797 = vsub.f32 %v126, %v1796
    %v1798 = vand.u32 %v1797, 4294901760
    %1799 = vmatpush.msra.mxu0 %v1798
    %v1800 = vand.u32 %v122, 4294901760
    %v1801 = vsub.f32 %v122, %v1800
    %v1802 = vand.u32 %v1801, 4294901760
    %1803 = vmatpush.msra.mxu0 %v1802
    %v1804 = vand.u32 %v118, 4294901760
    %v1805 = vsub.f32 %v118, %v1804
    %v1806 = vand.u32 %v1805, 4294901760
    %1807 = vmatpush.msra.mxu0 %v1806
    %v1808 = vand.u32 %v114, 4294901760
    %v1809 = vsub.f32 %v114, %v1808
    %v1810 = vand.u32 %v1809, 4294901760
    %1811 = vmatpush.msra.mxu0 %v1810
    %v1812 = vand.u32 %v110, 4294901760
    %v1813 = vsub.f32 %v110, %v1812
    %v1814 = vand.u32 %v1813, 4294901760
    %1815 = vmatpush.msra.mxu0 %v1814
    %v1816 = vand.u32 %v106, 4294901760
    %v1817 = vsub.f32 %v106, %v1816
    %v1818 = vand.u32 %v1817, 4294901760
    %1819 = vmatpush.msra.mxu0 %v1818
    %v1820 = vand.u32 %v102, 4294901760
    %v1821 = vsub.f32 %v102, %v1820
    %v1822 = vand.u32 %v1821, 4294901760
    %1823 = vmatpush.msra.mxu0 %v1822
    %v1824 = vand.u32 %v98, 4294901760
    %v1825 = vsub.f32 %v98, %v1824
    %v1826 = vand.u32 %v1825, 4294901760
    %1827 = vmatpush.msra.mxu0 %v1826
    %v1828 = vand.u32 %v94, 4294901760
    %v1829 = vsub.f32 %v94, %v1828
    %v1830 = vand.u32 %v1829, 4294901760
    %1831 = vmatpush.msra.mxu0 %v1830
    %v1832 = vand.u32 %v90, 4294901760
    %v1833 = vsub.f32 %v90, %v1832
    %v1834 = vand.u32 %v1833, 4294901760
    %1835 = vmatpush.msra.mxu0 %v1834
    %v1836 = vand.u32 %v86, 4294901760
    %v1837 = vsub.f32 %v86, %v1836
    %v1838 = vand.u32 %v1837, 4294901760
    %1839 = vmatpush.msra.mxu0 %v1838
    %v1840 = vand.u32 %v82, 4294901760
    %v1841 = vsub.f32 %v82, %v1840
    %v1842 = vand.u32 %v1841, 4294901760
    %1843 = vmatpush.msra.mxu0 %v1842
    %v1844 = vand.u32 %v78, 4294901760
    %v1845 = vsub.f32 %v78, %v1844
    %v1846 = vand.u32 %v1845, 4294901760
    %1847 = vmatpush.msra.mxu0 %v1846
    %v1848 = vand.u32 %v74, 4294901760
    %v1849 = vsub.f32 %v74, %v1848
    %v1850 = vand.u32 %v1849, 4294901760
    %1851 = vmatpush.msra.mxu0 %v1850
    %v1852 = vand.u32 %v70, 4294901760
    %v1853 = vsub.f32 %v70, %v1852
    %v1854 = vand.u32 %v1853, 4294901760
    %1855 = vmatpush.msra.mxu0 %v1854
    %v1856 = vand.u32 %v66, 4294901760
    %v1857 = vsub.f32 %v66, %v1856
    %v1858 = vand.u32 %v1857, 4294901760
    %1859 = vmatpush.msra.mxu0 %v1858
    %v1860 = vand.u32 %v193, 4294901760
    %1861 = vmatmul.f32.gmra.mxu0 %v1860
    %v1862 = vpop.f32.mrf.mxu0
    %v1863 = vadd.f32 %v1794, %v1862
    %1864 = vdwg.mxu0
    %v1865 = vand.u32 %v126, 4294901760
    %1866 = vmatpush.msra.mxu0 %v1865
    %v1867 = vand.u32 %v122, 4294901760
    %1868 = vmatpush.msra.mxu0 %v1867
    %v1869 = vand.u32 %v118, 4294901760
    %1870 = vmatpush.msra.mxu0 %v1869
    %v1871 = vand.u32 %v114, 4294901760
    %1872 = vmatpush.msra.mxu0 %v1871
    %v1873 = vand.u32 %v110, 4294901760
    %1874 = vmatpush.msra.mxu0 %v1873
    %v1875 = vand.u32 %v106, 4294901760
    %1876 = vmatpush.msra.mxu0 %v1875
    %v1877 = vand.u32 %v102, 4294901760
    %1878 = vmatpush.msra.mxu0 %v1877
    %v1879 = vand.u32 %v98, 4294901760
    %1880 = vmatpush.msra.mxu0 %v1879
    %v1881 = vand.u32 %v94, 4294901760
    %1882 = vmatpush.msra.mxu0 %v1881
    %v1883 = vand.u32 %v90, 4294901760
    %1884 = vmatpush.msra.mxu0 %v1883
    %v1885 = vand.u32 %v86, 4294901760
    %1886 = vmatpush.msra.mxu0 %v1885
    %v1887 = vand.u32 %v82, 4294901760
    %1888 = vmatpush.msra.mxu0 %v1887
    %v1889 = vand.u32 %v78, 4294901760
    %1890 = vmatpush.msra.mxu0 %v1889
    %v1891 = vand.u32 %v74, 4294901760
    %1892 = vmatpush.msra.mxu0 %v1891
    %v1893 = vand.u32 %v70, 4294901760
    %1894 = vmatpush.msra.mxu0 %v1893
    %v1895 = vand.u32 %v66, 4294901760
    %1896 = vmatpush.msra.mxu0 %v1895
    %v1897 = vand.u32 %v193, 4294901760
    %1898 = vmatmul.f32.gmra.mxu0 %v1897
    %v1899 = vpop.f32.mrf.mxu0
    %v1900 = vadd.f32 %v1863, %v1899
    %1901 = vdwg.mxu0
    %v1902 = vand.u32 %v190, 4294901760
    %1903 = vmatpush.msra.mxu0 %v1902
    %v1904 = vand.u32 %v186, 4294901760
    %1905 = vmatpush.msra.mxu0 %v1904
    %v1906 = vand.u32 %v182, 4294901760
    %1907 = vmatpush.msra.mxu0 %v1906
    %v1908 = vand.u32 %v178, 4294901760
    %1909 = vmatpush.msra.mxu0 %v1908
    %v1910 = vand.u32 %v174, 4294901760
    %1911 = vmatpush.msra.mxu0 %v1910
    %v1912 = vand.u32 %v170, 4294901760
    %1913 = vmatpush.msra.mxu0 %v1912
    %v1914 = vand.u32 %v166, 4294901760
    %1915 = vmatpush.msra.mxu0 %v1914
    %v1916 = vand.u32 %v162, 4294901760
    %1917 = vmatpush.msra.mxu0 %v1916
    %v1918 = vand.u32 %v158, 4294901760
    %1919 = vmatpush.msra.mxu0 %v1918
    %v1920 = vand.u32 %v154, 4294901760
    %1921 = vmatpush.msra.mxu0 %v1920
    %v1922 = vand.u32 %v150, 4294901760
    %1923 = vmatpush.msra.mxu0 %v1922
    %v1924 = vand.u32 %v146, 4294901760
    %1925 = vmatpush.msra.mxu0 %v1924
    %v1926 = vand.u32 %v142, 4294901760
    %1927 = vmatpush.msra.mxu0 %v1926
    %v1928 = vand.u32 %v138, 4294901760
    %1929 = vmatpush.msra.mxu0 %v1928
    %v1930 = vand.u32 %v134, 4294901760
    %1931 = vmatpush.msra.mxu0 %v1930
    %v1932 = vand.u32 %v130, 4294901760
    %1933 = vmatpush.msra.mxu0 %v1932
    %v1934 = vand.u32 %v194, 4294901760
    %v1935 = vsub.f32 %v194, %v1934
    %v1936 = vand.u32 %v1935, 4294901760
    %v1937 = vsub.f32 %v1935, %v1936
    %v1938 = vand.u32 %v1937, 4294901760
    %1939 = vmatmul.f32.gmra.mxu0 %v1938
    %v1940 = vpop.f32.mrf.mxu0
    %v1941 = vadd.f32 %v1900, %v1940
    %1942 = vdwg.mxu0
    %v1943 = vand.u32 %v190, 4294901760
    %v1944 = vsub.f32 %v190, %v1943
    %v1945 = vand.u32 %v1944, 4294901760
    %v1946 = vsub.f32 %v1944, %v1945
    %v1947 = vand.u32 %v1946, 4294901760
    %1948 = vmatpush.msra.mxu0 %v1947
    %v1949 = vand.u32 %v186, 4294901760
    %v1950 = vsub.f32 %v186, %v1949
    %v1951 = vand.u32 %v1950, 4294901760
    %v1952 = vsub.f32 %v1950, %v1951
    %v1953 = vand.u32 %v1952, 4294901760
    %1954 = vmatpush.msra.mxu0 %v1953
    %v1955 = vand.u32 %v182, 4294901760
    %v1956 = vsub.f32 %v182, %v1955
    %v1957 = vand.u32 %v1956, 4294901760
    %v1958 = vsub.f32 %v1956, %v1957
    %v1959 = vand.u32 %v1958, 4294901760
    %1960 = vmatpush.msra.mxu0 %v1959
    %v1961 = vand.u32 %v178, 4294901760
    %v1962 = vsub.f32 %v178, %v1961
    %v1963 = vand.u32 %v1962, 4294901760
    %v1964 = vsub.f32 %v1962, %v1963
    %v1965 = vand.u32 %v1964, 4294901760
    %1966 = vmatpush.msra.mxu0 %v1965
    %v1967 = vand.u32 %v174, 4294901760
    %v1968 = vsub.f32 %v174, %v1967
    %v1969 = vand.u32 %v1968, 4294901760
    %v1970 = vsub.f32 %v1968, %v1969
    %v1971 = vand.u32 %v1970, 4294901760
    %1972 = vmatpush.msra.mxu0 %v1971
    %v1973 = vand.u32 %v170, 4294901760
    %v1974 = vsub.f32 %v170, %v1973
    %v1975 = vand.u32 %v1974, 4294901760
    %v1976 = vsub.f32 %v1974, %v1975
    %v1977 = vand.u32 %v1976, 4294901760
    %1978 = vmatpush.msra.mxu0 %v1977
    %v1979 = vand.u32 %v166, 4294901760
    %v1980 = vsub.f32 %v166, %v1979
    %v1981 = vand.u32 %v1980, 4294901760
    %v1982 = vsub.f32 %v1980, %v1981
    %v1983 = vand.u32 %v1982, 4294901760
    %1984 = vmatpush.msra.mxu0 %v1983
    %v1985 = vand.u32 %v162, 4294901760
    %v1986 = vsub.f32 %v162, %v1985
    %v1987 = vand.u32 %v1986, 4294901760
    %v1988 = vsub.f32 %v1986, %v1987
    %v1989 = vand.u32 %v1988, 4294901760
    %1990 = vmatpush.msra.mxu0 %v1989
    %v1991 = vand.u32 %v158, 4294901760
    %v1992 = vsub.f32 %v158, %v1991
    %v1993 = vand.u32 %v1992, 4294901760
    %v1994 = vsub.f32 %v1992, %v1993
    %v1995 = vand.u32 %v1994, 4294901760
    %1996 = vmatpush.msra.mxu0 %v1995
    %v1997 = vand.u32 %v154, 4294901760
    %v1998 = vsub.f32 %v154, %v1997
    %v1999 = vand.u32 %v1998, 4294901760
    %v2000 = vsub.f32 %v1998, %v1999
    %v2001 = vand.u32 %v2000, 4294901760
    %2002 = vmatpush.msra.mxu0 %v2001
    %v2003 = vand.u32 %v150, 4294901760
    %v2004 = vsub.f32 %v150, %v2003
    %v2005 = vand.u32 %v2004, 4294901760
    %v2006 = vsub.f32 %v2004, %v2005
    %v2007 = vand.u32 %v2006, 4294901760
    %2008 = vmatpush.msra.mxu0 %v2007
    %v2009 = vand.u32 %v146, 4294901760
    %v2010 = vsub.f32 %v146, %v2009
    %v2011 = vand.u32 %v2010, 4294901760
    %v2012 = vsub.f32 %v2010, %v2011
    %v2013 = vand.u32 %v2012, 4294901760
    %2014 = vmatpush.msra.mxu0 %v2013
    %v2015 = vand.u32 %v142, 4294901760
    %v2016 = vsub.f32 %v142, %v2015
    %v2017 = vand.u32 %v2016, 4294901760
    %v2018 = vsub.f32 %v2016, %v2017
    %v2019 = vand.u32 %v2018, 4294901760
    %2020 = vmatpush.msra.mxu0 %v2019
    %v2021 = vand.u32 %v138, 4294901760
    %v2022 = vsub.f32 %v138, %v2021
    %v2023 = vand.u32 %v2022, 4294901760
    %v2024 = vsub.f32 %v2022, %v2023
    %v2025 = vand.u32 %v2024, 4294901760
    %2026 = vmatpush.msra.mxu0 %v2025
    %v2027 = vand.u32 %v134, 4294901760
    %v2028 = vsub.f32 %v134, %v2027
    %v2029 = vand.u32 %v2028, 4294901760
    %v2030 = vsub.f32 %v2028, %v2029
    %v2031 = vand.u32 %v2030, 4294901760
    %2032 = vmatpush.msra.mxu0 %v2031
    %v2033 = vand.u32 %v130, 4294901760
    %v2034 = vsub.f32 %v130, %v2033
    %v2035 = vand.u32 %v2034, 4294901760
    %v2036 = vsub.f32 %v2034, %v2035
    %v2037 = vand.u32 %v2036, 4294901760
    %2038 = vmatpush.msra.mxu0 %v2037
    %v2039 = vand.u32 %v194, 4294901760
    %2040 = vmatmul.f32.gmra.mxu0 %v2039
    %v2041 = vpop.f32.mrf.mxu0
    %v2042 = vadd.f32 %v1941, %v2041
    %2043 = vdwg.mxu0
    %v2044 = vand.u32 %v190, 4294901760
    %v2045 = vsub.f32 %v190, %v2044
    %2046 = vmatpush.msra.mxu0 %v2045
    %v2047 = vand.u32 %v186, 4294901760
    %v2048 = vsub.f32 %v186, %v2047
    %2049 = vmatpush.msra.mxu0 %v2048
    %v2050 = vand.u32 %v182, 4294901760
    %v2051 = vsub.f32 %v182, %v2050
    %2052 = vmatpush.msra.mxu0 %v2051
    %v2053 = vand.u32 %v178, 4294901760
    %v2054 = vsub.f32 %v178, %v2053
    %2055 = vmatpush.msra.mxu0 %v2054
    %v2056 = vand.u32 %v174, 4294901760
    %v2057 = vsub.f32 %v174, %v2056
    %2058 = vmatpush.msra.mxu0 %v2057
    %v2059 = vand.u32 %v170, 4294901760
    %v2060 = vsub.f32 %v170, %v2059
    %2061 = vmatpush.msra.mxu0 %v2060
    %v2062 = vand.u32 %v166, 4294901760
    %v2063 = vsub.f32 %v166, %v2062
    %2064 = vmatpush.msra.mxu0 %v2063
    %v2065 = vand.u32 %v162, 4294901760
    %v2066 = vsub.f32 %v162, %v2065
    %2067 = vmatpush.msra.mxu0 %v2066
    %v2068 = vand.u32 %v158, 4294901760
    %v2069 = vsub.f32 %v158, %v2068
    %2070 = vmatpush.msra.mxu0 %v2069
    %v2071 = vand.u32 %v154, 4294901760
    %v2072 = vsub.f32 %v154, %v2071
    %2073 = vmatpush.msra.mxu0 %v2072
    %v2074 = vand.u32 %v150, 4294901760
    %v2075 = vsub.f32 %v150, %v2074
    %2076 = vmatpush.msra.mxu0 %v2075
    %v2077 = vand.u32 %v146, 4294901760
    %v2078 = vsub.f32 %v146, %v2077
    %2079 = vmatpush.msra.mxu0 %v2078
    %v2080 = vand.u32 %v142, 4294901760
    %v2081 = vsub.f32 %v142, %v2080
    %2082 = vmatpush.msra.mxu0 %v2081
    %v2083 = vand.u32 %v138, 4294901760
    %v2084 = vsub.f32 %v138, %v2083
    %2085 = vmatpush.msra.mxu0 %v2084
    %v2086 = vand.u32 %v134, 4294901760
    %v2087 = vsub.f32 %v134, %v2086
    %2088 = vmatpush.msra.mxu0 %v2087
    %v2089 = vand.u32 %v130, 4294901760
    %v2090 = vsub.f32 %v130, %v2089
    %2091 = vmatpush.msra.mxu0 %v2090
    %v2092 = vand.u32 %v194, 4294901760
    %v2093 = vsub.f32 %v194, %v2092
    %2094 = vmatmul.f32.gmra.mxu0 %v2093
    %v2095 = vpop.f32.mrf.mxu0
    %v2096 = vadd.f32 %v2042, %v2095
    %2097 = vdwg.mxu0
    %v2098 = vand.u32 %v190, 4294901760
    %2099 = vmatpush.msra.mxu0 %v2098
    %v2100 = vand.u32 %v186, 4294901760
    %2101 = vmatpush.msra.mxu0 %v2100
    %v2102 = vand.u32 %v182, 4294901760
    %2103 = vmatpush.msra.mxu0 %v2102
    %v2104 = vand.u32 %v178, 4294901760
    %2105 = vmatpush.msra.mxu0 %v2104
    %v2106 = vand.u32 %v174, 4294901760
    %2107 = vmatpush.msra.mxu0 %v2106
    %v2108 = vand.u32 %v170, 4294901760
    %2109 = vmatpush.msra.mxu0 %v2108
    %v2110 = vand.u32 %v166, 4294901760
    %2111 = vmatpush.msra.mxu0 %v2110
    %v2112 = vand.u32 %v162, 4294901760
    %2113 = vmatpush.msra.mxu0 %v2112
    %v2114 = vand.u32 %v158, 4294901760
    %2115 = vmatpush.msra.mxu0 %v2114
    %v2116 = vand.u32 %v154, 4294901760
    %2117 = vmatpush.msra.mxu0 %v2116
    %v2118 = vand.u32 %v150, 4294901760
    %2119 = vmatpush.msra.mxu0 %v2118
    %v2120 = vand.u32 %v146, 4294901760
    %2121 = vmatpush.msra.mxu0 %v2120
    %v2122 = vand.u32 %v142, 4294901760
    %2123 = vmatpush.msra.mxu0 %v2122
    %v2124 = vand.u32 %v138, 4294901760
    %2125 = vmatpush.msra.mxu0 %v2124
    %v2126 = vand.u32 %v134, 4294901760
    %2127 = vmatpush.msra.mxu0 %v2126
    %v2128 = vand.u32 %v130, 4294901760
    %2129 = vmatpush.msra.mxu0 %v2128
    %v2130 = vand.u32 %v194, 4294901760
    %v2131 = vsub.f32 %v194, %v2130
    %v2132 = vand.u32 %v2131, 4294901760
    %2133 = vmatmul.f32.gmra.mxu0 %v2132
    %v2134 = vpop.f32.mrf.mxu0
    %v2135 = vadd.f32 %v2096, %v2134
    %2136 = vdwg.mxu0
    %v2137 = vand.u32 %v190, 4294901760
    %v2138 = vsub.f32 %v190, %v2137
    %v2139 = vand.u32 %v2138, 4294901760
    %2140 = vmatpush.msra.mxu0 %v2139
    %v2141 = vand.u32 %v186, 4294901760
    %v2142 = vsub.f32 %v186, %v2141
    %v2143 = vand.u32 %v2142, 4294901760
    %2144 = vmatpush.msra.mxu0 %v2143
    %v2145 = vand.u32 %v182, 4294901760
    %v2146 = vsub.f32 %v182, %v2145
    %v2147 = vand.u32 %v2146, 4294901760
    %2148 = vmatpush.msra.mxu0 %v2147
    %v2149 = vand.u32 %v178, 4294901760
    %v2150 = vsub.f32 %v178, %v2149
    %v2151 = vand.u32 %v2150, 4294901760
    %2152 = vmatpush.msra.mxu0 %v2151
    %v2153 = vand.u32 %v174, 4294901760
    %v2154 = vsub.f32 %v174, %v2153
    %v2155 = vand.u32 %v2154, 4294901760
    %2156 = vmatpush.msra.mxu0 %v2155
    %v2157 = vand.u32 %v170, 4294901760
    %v2158 = vsub.f32 %v170, %v2157
    %v2159 = vand.u32 %v2158, 4294901760
    %2160 = vmatpush.msra.mxu0 %v2159
    %v2161 = vand.u32 %v166, 4294901760
    %v2162 = vsub.f32 %v166, %v2161
    %v2163 = vand.u32 %v2162, 4294901760
    %2164 = vmatpush.msra.mxu0 %v2163
    %v2165 = vand.u32 %v162, 4294901760
    %v2166 = vsub.f32 %v162, %v2165
    %v2167 = vand.u32 %v2166, 4294901760
    %2168 = vmatpush.msra.mxu0 %v2167
    %v2169 = vand.u32 %v158, 4294901760
    %v2170 = vsub.f32 %v158, %v2169
    %v2171 = vand.u32 %v2170, 4294901760
    %2172 = vmatpush.msra.mxu0 %v2171
    %v2173 = vand.u32 %v154, 4294901760
    %v2174 = vsub.f32 %v154, %v2173
    %v2175 = vand.u32 %v2174, 4294901760
    %2176 = vmatpush.msra.mxu0 %v2175
    %v2177 = vand.u32 %v150, 4294901760
    %v2178 = vsub.f32 %v150, %v2177
    %v2179 = vand.u32 %v2178, 4294901760
    %2180 = vmatpush.msra.mxu0 %v2179
    %v2181 = vand.u32 %v146, 4294901760
    %v2182 = vsub.f32 %v146, %v2181
    %v2183 = vand.u32 %v2182, 4294901760
    %2184 = vmatpush.msra.mxu0 %v2183
    %v2185 = vand.u32 %v142, 4294901760
    %v2186 = vsub.f32 %v142, %v2185
    %v2187 = vand.u32 %v2186, 4294901760
    %2188 = vmatpush.msra.mxu0 %v2187
    %v2189 = vand.u32 %v138, 4294901760
    %v2190 = vsub.f32 %v138, %v2189
    %v2191 = vand.u32 %v2190, 4294901760
    %2192 = vmatpush.msra.mxu0 %v2191
    %v2193 = vand.u32 %v134, 4294901760
    %v2194 = vsub.f32 %v134, %v2193
    %v2195 = vand.u32 %v2194, 4294901760
    %2196 = vmatpush.msra.mxu0 %v2195
    %v2197 = vand.u32 %v130, 4294901760
    %v2198 = vsub.f32 %v130, %v2197
    %v2199 = vand.u32 %v2198, 4294901760
    %2200 = vmatpush.msra.mxu0 %v2199
    %v2201 = vand.u32 %v194, 4294901760
    %2202 = vmatmul.f32.gmra.mxu0 %v2201
    %v2203 = vpop.f32.mrf.mxu0
    %v2204 = vadd.f32 %v2135, %v2203
    %2205 = vdwg.mxu0
    %v2206 = vand.u32 %v190, 4294901760
    %2207 = vmatpush.msra.mxu0 %v2206
    %v2208 = vand.u32 %v186, 4294901760
    %2209 = vmatpush.msra.mxu0 %v2208
    %v2210 = vand.u32 %v182, 4294901760
    %2211 = vmatpush.msra.mxu0 %v2210
    %v2212 = vand.u32 %v178, 4294901760
    %2213 = vmatpush.msra.mxu0 %v2212
    %v2214 = vand.u32 %v174, 4294901760
    %2215 = vmatpush.msra.mxu0 %v2214
    %v2216 = vand.u32 %v170, 4294901760
    %2217 = vmatpush.msra.mxu0 %v2216
    %v2218 = vand.u32 %v166, 4294901760
    %2219 = vmatpush.msra.mxu0 %v2218
    %v2220 = vand.u32 %v162, 4294901760
    %2221 = vmatpush.msra.mxu0 %v2220
    %v2222 = vand.u32 %v158, 4294901760
    %2223 = vmatpush.msra.mxu0 %v2222
    %v2224 = vand.u32 %v154, 4294901760
    %2225 = vmatpush.msra.mxu0 %v2224
    %v2226 = vand.u32 %v150, 4294901760
    %2227 = vmatpush.msra.mxu0 %v2226
    %v2228 = vand.u32 %v146, 4294901760
    %2229 = vmatpush.msra.mxu0 %v2228
    %v2230 = vand.u32 %v142, 4294901760
    %2231 = vmatpush.msra.mxu0 %v2230
    %v2232 = vand.u32 %v138, 4294901760
    %2233 = vmatpush.msra.mxu0 %v2232
    %v2234 = vand.u32 %v134, 4294901760
    %2235 = vmatpush.msra.mxu0 %v2234
    %v2236 = vand.u32 %v130, 4294901760
    %2237 = vmatpush.msra.mxu0 %v2236
    %v2238 = vand.u32 %v194, 4294901760
    %2239 = vmatmul.f32.gmra.mxu0 %v2238
    %v2240 = vpop.f32.mrf.mxu0
    %v2241 = vadd.f32 %v2204, %v2240
    %2242 = vdwg.mxu0
    %v2243 = vand.u32 %v127, 4294901760
    %2244 = vmatpush.msra.mxu0 %v2243
    %v2245 = vand.u32 %v123, 4294901760
    %2246 = vmatpush.msra.mxu0 %v2245
    %v2247 = vand.u32 %v119, 4294901760
    %2248 = vmatpush.msra.mxu0 %v2247
    %v2249 = vand.u32 %v115, 4294901760
    %2250 = vmatpush.msra.mxu0 %v2249
    %v2251 = vand.u32 %v111, 4294901760
    %2252 = vmatpush.msra.mxu0 %v2251
    %v2253 = vand.u32 %v107, 4294901760
    %2254 = vmatpush.msra.mxu0 %v2253
    %v2255 = vand.u32 %v103, 4294901760
    %2256 = vmatpush.msra.mxu0 %v2255
    %v2257 = vand.u32 %v99, 4294901760
    %2258 = vmatpush.msra.mxu0 %v2257
    %v2259 = vand.u32 %v95, 4294901760
    %2260 = vmatpush.msra.mxu0 %v2259
    %v2261 = vand.u32 %v91, 4294901760
    %2262 = vmatpush.msra.mxu0 %v2261
    %v2263 = vand.u32 %v87, 4294901760
    %2264 = vmatpush.msra.mxu0 %v2263
    %v2265 = vand.u32 %v83, 4294901760
    %2266 = vmatpush.msra.mxu0 %v2265
    %v2267 = vand.u32 %v79, 4294901760
    %2268 = vmatpush.msra.mxu0 %v2267
    %v2269 = vand.u32 %v75, 4294901760
    %2270 = vmatpush.msra.mxu0 %v2269
    %v2271 = vand.u32 %v71, 4294901760
    %2272 = vmatpush.msra.mxu0 %v2271
    %v2273 = vand.u32 %v67, 4294901760
    %2274 = vmatpush.msra.mxu0 %v2273
    %v2275 = vand.u32 %v193, 4294901760
    %v2276 = vsub.f32 %v193, %v2275
    %v2277 = vand.u32 %v2276, 4294901760
    %v2278 = vsub.f32 %v2276, %v2277
    %v2279 = vand.u32 %v2278, 4294901760
    %2280 = vmatmul.f32.gmra.mxu0 %v2279
    %v2281 = vpop.f32.mrf.mxu0
    %v2282 = vadd.f32 0.0, %v2281
    %2283 = vdwg.mxu0
    %v2284 = vand.u32 %v127, 4294901760
    %v2285 = vsub.f32 %v127, %v2284
    %v2286 = vand.u32 %v2285, 4294901760
    %v2287 = vsub.f32 %v2285, %v2286
    %v2288 = vand.u32 %v2287, 4294901760
    %2289 = vmatpush.msra.mxu0 %v2288
    %v2290 = vand.u32 %v123, 4294901760
    %v2291 = vsub.f32 %v123, %v2290
    %v2292 = vand.u32 %v2291, 4294901760
    %v2293 = vsub.f32 %v2291, %v2292
    %v2294 = vand.u32 %v2293, 4294901760
    %2295 = vmatpush.msra.mxu0 %v2294
    %v2296 = vand.u32 %v119, 4294901760
    %v2297 = vsub.f32 %v119, %v2296
    %v2298 = vand.u32 %v2297, 4294901760
    %v2299 = vsub.f32 %v2297, %v2298
    %v2300 = vand.u32 %v2299, 4294901760
    %2301 = vmatpush.msra.mxu0 %v2300
    %v2302 = vand.u32 %v115, 4294901760
    %v2303 = vsub.f32 %v115, %v2302
    %v2304 = vand.u32 %v2303, 4294901760
    %v2305 = vsub.f32 %v2303, %v2304
    %v2306 = vand.u32 %v2305, 4294901760
    %2307 = vmatpush.msra.mxu0 %v2306
    %v2308 = vand.u32 %v111, 4294901760
    %v2309 = vsub.f32 %v111, %v2308
    %v2310 = vand.u32 %v2309, 4294901760
    %v2311 = vsub.f32 %v2309, %v2310
    %v2312 = vand.u32 %v2311, 4294901760
    %2313 = vmatpush.msra.mxu0 %v2312
    %v2314 = vand.u32 %v107, 4294901760
    %v2315 = vsub.f32 %v107, %v2314
    %v2316 = vand.u32 %v2315, 4294901760
    %v2317 = vsub.f32 %v2315, %v2316
    %v2318 = vand.u32 %v2317, 4294901760
    %2319 = vmatpush.msra.mxu0 %v2318
    %v2320 = vand.u32 %v103, 4294901760
    %v2321 = vsub.f32 %v103, %v2320
    %v2322 = vand.u32 %v2321, 4294901760
    %v2323 = vsub.f32 %v2321, %v2322
    %v2324 = vand.u32 %v2323, 4294901760
    %2325 = vmatpush.msra.mxu0 %v2324
    %v2326 = vand.u32 %v99, 4294901760
    %v2327 = vsub.f32 %v99, %v2326
    %v2328 = vand.u32 %v2327, 4294901760
    %v2329 = vsub.f32 %v2327, %v2328
    %v2330 = vand.u32 %v2329, 4294901760
    %2331 = vmatpush.msra.mxu0 %v2330
    %v2332 = vand.u32 %v95, 4294901760
    %v2333 = vsub.f32 %v95, %v2332
    %v2334 = vand.u32 %v2333, 4294901760
    %v2335 = vsub.f32 %v2333, %v2334
    %v2336 = vand.u32 %v2335, 4294901760
    %2337 = vmatpush.msra.mxu0 %v2336
    %v2338 = vand.u32 %v91, 4294901760
    %v2339 = vsub.f32 %v91, %v2338
    %v2340 = vand.u32 %v2339, 4294901760
    %v2341 = vsub.f32 %v2339, %v2340
    %v2342 = vand.u32 %v2341, 4294901760
    %2343 = vmatpush.msra.mxu0 %v2342
    %v2344 = vand.u32 %v87, 4294901760
    %v2345 = vsub.f32 %v87, %v2344
    %v2346 = vand.u32 %v2345, 4294901760
    %v2347 = vsub.f32 %v2345, %v2346
    %v2348 = vand.u32 %v2347, 4294901760
    %2349 = vmatpush.msra.mxu0 %v2348
    %v2350 = vand.u32 %v83, 4294901760
    %v2351 = vsub.f32 %v83, %v2350
    %v2352 = vand.u32 %v2351, 4294901760
    %v2353 = vsub.f32 %v2351, %v2352
    %v2354 = vand.u32 %v2353, 4294901760
    %2355 = vmatpush.msra.mxu0 %v2354
    %v2356 = vand.u32 %v79, 4294901760
    %v2357 = vsub.f32 %v79, %v2356
    %v2358 = vand.u32 %v2357, 4294901760
    %v2359 = vsub.f32 %v2357, %v2358
    %v2360 = vand.u32 %v2359, 4294901760
    %2361 = vmatpush.msra.mxu0 %v2360
    %v2362 = vand.u32 %v75, 4294901760
    %v2363 = vsub.f32 %v75, %v2362
    %v2364 = vand.u32 %v2363, 4294901760
    %v2365 = vsub.f32 %v2363, %v2364
    %v2366 = vand.u32 %v2365, 4294901760
    %2367 = vmatpush.msra.mxu0 %v2366
    %v2368 = vand.u32 %v71, 4294901760
    %v2369 = vsub.f32 %v71, %v2368
    %v2370 = vand.u32 %v2369, 4294901760
    %v2371 = vsub.f32 %v2369, %v2370
    %v2372 = vand.u32 %v2371, 4294901760
    %2373 = vmatpush.msra.mxu0 %v2372
    %v2374 = vand.u32 %v67, 4294901760
    %v2375 = vsub.f32 %v67, %v2374
    %v2376 = vand.u32 %v2375, 4294901760
    %v2377 = vsub.f32 %v2375, %v2376
    %v2378 = vand.u32 %v2377, 4294901760
    %2379 = vmatpush.msra.mxu0 %v2378
    %v2380 = vand.u32 %v193, 4294901760
    %2381 = vmatmul.f32.gmra.mxu0 %v2380
    %v2382 = vpop.f32.mrf.mxu0
    %v2383 = vadd.f32 %v2282, %v2382
    %2384 = vdwg.mxu0
    %v2385 = vand.u32 %v127, 4294901760
    %v2386 = vsub.f32 %v127, %v2385
    %2387 = vmatpush.msra.mxu0 %v2386
    %v2388 = vand.u32 %v123, 4294901760
    %v2389 = vsub.f32 %v123, %v2388
    %2390 = vmatpush.msra.mxu0 %v2389
    %v2391 = vand.u32 %v119, 4294901760
    %v2392 = vsub.f32 %v119, %v2391
    %2393 = vmatpush.msra.mxu0 %v2392
    %v2394 = vand.u32 %v115, 4294901760
    %v2395 = vsub.f32 %v115, %v2394
    %2396 = vmatpush.msra.mxu0 %v2395
    %v2397 = vand.u32 %v111, 4294901760
    %v2398 = vsub.f32 %v111, %v2397
    %2399 = vmatpush.msra.mxu0 %v2398
    %v2400 = vand.u32 %v107, 4294901760
    %v2401 = vsub.f32 %v107, %v2400
    %2402 = vmatpush.msra.mxu0 %v2401
    %v2403 = vand.u32 %v103, 4294901760
    %v2404 = vsub.f32 %v103, %v2403
    %2405 = vmatpush.msra.mxu0 %v2404
    %v2406 = vand.u32 %v99, 4294901760
    %v2407 = vsub.f32 %v99, %v2406
    %2408 = vmatpush.msra.mxu0 %v2407
    %v2409 = vand.u32 %v95, 4294901760
    %v2410 = vsub.f32 %v95, %v2409
    %2411 = vmatpush.msra.mxu0 %v2410
    %v2412 = vand.u32 %v91, 4294901760
    %v2413 = vsub.f32 %v91, %v2412
    %2414 = vmatpush.msra.mxu0 %v2413
    %v2415 = vand.u32 %v87, 4294901760
    %v2416 = vsub.f32 %v87, %v2415
    %2417 = vmatpush.msra.mxu0 %v2416
    %v2418 = vand.u32 %v83, 4294901760
    %v2419 = vsub.f32 %v83, %v2418
    %2420 = vmatpush.msra.mxu0 %v2419
    %v2421 = vand.u32 %v79, 4294901760
    %v2422 = vsub.f32 %v79, %v2421
    %2423 = vmatpush.msra.mxu0 %v2422
    %v2424 = vand.u32 %v75, 4294901760
    %v2425 = vsub.f32 %v75, %v2424
    %2426 = vmatpush.msra.mxu0 %v2425
    %v2427 = vand.u32 %v71, 4294901760
    %v2428 = vsub.f32 %v71, %v2427
    %2429 = vmatpush.msra.mxu0 %v2428
    %v2430 = vand.u32 %v67, 4294901760
    %v2431 = vsub.f32 %v67, %v2430
    %2432 = vmatpush.msra.mxu0 %v2431
    %v2433 = vand.u32 %v193, 4294901760
    %v2434 = vsub.f32 %v193, %v2433
    %2435 = vmatmul.f32.gmra.mxu0 %v2434
    %v2436 = vpop.f32.mrf.mxu0
    %v2437 = vadd.f32 %v2383, %v2436
    %2438 = vdwg.mxu0
    %v2439 = vand.u32 %v127, 4294901760
    %2440 = vmatpush.msra.mxu0 %v2439
    %v2441 = vand.u32 %v123, 4294901760
    %2442 = vmatpush.msra.mxu0 %v2441
    %v2443 = vand.u32 %v119, 4294901760
    %2444 = vmatpush.msra.mxu0 %v2443
    %v2445 = vand.u32 %v115, 4294901760
    %2446 = vmatpush.msra.mxu0 %v2445
    %v2447 = vand.u32 %v111, 4294901760
    %2448 = vmatpush.msra.mxu0 %v2447
    %v2449 = vand.u32 %v107, 4294901760
    %2450 = vmatpush.msra.mxu0 %v2449
    %v2451 = vand.u32 %v103, 4294901760
    %2452 = vmatpush.msra.mxu0 %v2451
    %v2453 = vand.u32 %v99, 4294901760
    %2454 = vmatpush.msra.mxu0 %v2453
    %v2455 = vand.u32 %v95, 4294901760
    %2456 = vmatpush.msra.mxu0 %v2455
    %v2457 = vand.u32 %v91, 4294901760
    %2458 = vmatpush.msra.mxu0 %v2457
    %v2459 = vand.u32 %v87, 4294901760
    %2460 = vmatpush.msra.mxu0 %v2459
    %v2461 = vand.u32 %v83, 4294901760
    %2462 = vmatpush.msra.mxu0 %v2461
    %v2463 = vand.u32 %v79, 4294901760
    %2464 = vmatpush.msra.mxu0 %v2463
    %v2465 = vand.u32 %v75, 4294901760
    %2466 = vmatpush.msra.mxu0 %v2465
    %v2467 = vand.u32 %v71, 4294901760
    %2468 = vmatpush.msra.mxu0 %v2467
    %v2469 = vand.u32 %v67, 4294901760
    %2470 = vmatpush.msra.mxu0 %v2469
    %v2471 = vand.u32 %v193, 4294901760
    %v2472 = vsub.f32 %v193, %v2471
    %v2473 = vand.u32 %v2472, 4294901760
    %2474 = vmatmul.f32.gmra.mxu0 %v2473
    %v2475 = vpop.f32.mrf.mxu0
    %v2476 = vadd.f32 %v2437, %v2475
    %2477 = vdwg.mxu0
    %v2478 = vand.u32 %v127, 4294901760
    %v2479 = vsub.f32 %v127, %v2478
    %v2480 = vand.u32 %v2479, 4294901760
    %2481 = vmatpush.msra.mxu0 %v2480
    %v2482 = vand.u32 %v123, 4294901760
    %v2483 = vsub.f32 %v123, %v2482
    %v2484 = vand.u32 %v2483, 4294901760
    %2485 = vmatpush.msra.mxu0 %v2484
    %v2486 = vand.u32 %v119, 4294901760
    %v2487 = vsub.f32 %v119, %v2486
    %v2488 = vand.u32 %v2487, 4294901760
    %2489 = vmatpush.msra.mxu0 %v2488
    %v2490 = vand.u32 %v115, 4294901760
    %v2491 = vsub.f32 %v115, %v2490
    %v2492 = vand.u32 %v2491, 4294901760
    %2493 = vmatpush.msra.mxu0 %v2492
    %v2494 = vand.u32 %v111, 4294901760
    %v2495 = vsub.f32 %v111, %v2494
    %v2496 = vand.u32 %v2495, 4294901760
    %2497 = vmatpush.msra.mxu0 %v2496
    %v2498 = vand.u32 %v107, 4294901760
    %v2499 = vsub.f32 %v107, %v2498
    %v2500 = vand.u32 %v2499, 4294901760
    %2501 = vmatpush.msra.mxu0 %v2500
    %v2502 = vand.u32 %v103, 4294901760
    %v2503 = vsub.f32 %v103, %v2502
    %v2504 = vand.u32 %v2503, 4294901760
    %2505 = vmatpush.msra.mxu0 %v2504
    %v2506 = vand.u32 %v99, 4294901760
    %v2507 = vsub.f32 %v99, %v2506
    %v2508 = vand.u32 %v2507, 4294901760
    %2509 = vmatpush.msra.mxu0 %v2508
    %v2510 = vand.u32 %v95, 4294901760
    %v2511 = vsub.f32 %v95, %v2510
    %v2512 = vand.u32 %v2511, 4294901760
    %2513 = vmatpush.msra.mxu0 %v2512
    %v2514 = vand.u32 %v91, 4294901760
    %v2515 = vsub.f32 %v91, %v2514
    %v2516 = vand.u32 %v2515, 4294901760
    %2517 = vmatpush.msra.mxu0 %v2516
    %v2518 = vand.u32 %v87, 4294901760
    %v2519 = vsub.f32 %v87, %v2518
    %v2520 = vand.u32 %v2519, 4294901760
    %2521 = vmatpush.msra.mxu0 %v2520
    %v2522 = vand.u32 %v83, 4294901760
    %v2523 = vsub.f32 %v83, %v2522
    %v2524 = vand.u32 %v2523, 4294901760
    %2525 = vmatpush.msra.mxu0 %v2524
    %v2526 = vand.u32 %v79, 4294901760
    %v2527 = vsub.f32 %v79, %v2526
    %v2528 = vand.u32 %v2527, 4294901760
    %2529 = vmatpush.msra.mxu0 %v2528
    %v2530 = vand.u32 %v75, 4294901760
    %v2531 = vsub.f32 %v75, %v2530
    %v2532 = vand.u32 %v2531, 4294901760
    %2533 = vmatpush.msra.mxu0 %v2532
    %v2534 = vand.u32 %v71, 4294901760
    %v2535 = vsub.f32 %v71, %v2534
    %v2536 = vand.u32 %v2535, 4294901760
    %2537 = vmatpush.msra.mxu0 %v2536
    %v2538 = vand.u32 %v67, 4294901760
    %v2539 = vsub.f32 %v67, %v2538
    %v2540 = vand.u32 %v2539, 4294901760
    %2541 = vmatpush.msra.mxu0 %v2540
    %v2542 = vand.u32 %v193, 4294901760
    %2543 = vmatmul.f32.gmra.mxu0 %v2542
    %v2544 = vpop.f32.mrf.mxu0
    %v2545 = vadd.f32 %v2476, %v2544
    %2546 = vdwg.mxu0
    %v2547 = vand.u32 %v127, 4294901760
    %2548 = vmatpush.msra.mxu0 %v2547
    %v2549 = vand.u32 %v123, 4294901760
    %2550 = vmatpush.msra.mxu0 %v2549
    %v2551 = vand.u32 %v119, 4294901760
    %2552 = vmatpush.msra.mxu0 %v2551
    %v2553 = vand.u32 %v115, 4294901760
    %2554 = vmatpush.msra.mxu0 %v2553
    %v2555 = vand.u32 %v111, 4294901760
    %2556 = vmatpush.msra.mxu0 %v2555
    %v2557 = vand.u32 %v107, 4294901760
    %2558 = vmatpush.msra.mxu0 %v2557
    %v2559 = vand.u32 %v103, 4294901760
    %2560 = vmatpush.msra.mxu0 %v2559
    %v2561 = vand.u32 %v99, 4294901760
    %2562 = vmatpush.msra.mxu0 %v2561
    %v2563 = vand.u32 %v95, 4294901760
    %2564 = vmatpush.msra.mxu0 %v2563
    %v2565 = vand.u32 %v91, 4294901760
    %2566 = vmatpush.msra.mxu0 %v2565
    %v2567 = vand.u32 %v87, 4294901760
    %2568 = vmatpush.msra.mxu0 %v2567
    %v2569 = vand.u32 %v83, 4294901760
    %2570 = vmatpush.msra.mxu0 %v2569
    %v2571 = vand.u32 %v79, 4294901760
    %2572 = vmatpush.msra.mxu0 %v2571
    %v2573 = vand.u32 %v75, 4294901760
    %2574 = vmatpush.msra.mxu0 %v2573
    %v2575 = vand.u32 %v71, 4294901760
    %2576 = vmatpush.msra.mxu0 %v2575
    %v2577 = vand.u32 %v67, 4294901760
    %2578 = vmatpush.msra.mxu0 %v2577
    %v2579 = vand.u32 %v193, 4294901760
    %2580 = vmatmul.f32.gmra.mxu0 %v2579
    %v2581 = vpop.f32.mrf.mxu0
    %v2582 = vadd.f32 %v2545, %v2581
    %2583 = vdwg.mxu0
    %v2584 = vand.u32 %v191, 4294901760
    %2585 = vmatpush.msra.mxu0 %v2584
    %v2586 = vand.u32 %v187, 4294901760
    %2587 = vmatpush.msra.mxu0 %v2586
    %v2588 = vand.u32 %v183, 4294901760
    %2589 = vmatpush.msra.mxu0 %v2588
    %v2590 = vand.u32 %v179, 4294901760
    %2591 = vmatpush.msra.mxu0 %v2590
    %v2592 = vand.u32 %v175, 4294901760
    %2593 = vmatpush.msra.mxu0 %v2592
    %v2594 = vand.u32 %v171, 4294901760
    %2595 = vmatpush.msra.mxu0 %v2594
    %v2596 = vand.u32 %v167, 4294901760
    %2597 = vmatpush.msra.mxu0 %v2596
    %v2598 = vand.u32 %v163, 4294901760
    %2599 = vmatpush.msra.mxu0 %v2598
    %v2600 = vand.u32 %v159, 4294901760
    %2601 = vmatpush.msra.mxu0 %v2600
    %v2602 = vand.u32 %v155, 4294901760
    %2603 = vmatpush.msra.mxu0 %v2602
    %v2604 = vand.u32 %v151, 4294901760
    %2605 = vmatpush.msra.mxu0 %v2604
    %v2606 = vand.u32 %v147, 4294901760
    %2607 = vmatpush.msra.mxu0 %v2606
    %v2608 = vand.u32 %v143, 4294901760
    %2609 = vmatpush.msra.mxu0 %v2608
    %v2610 = vand.u32 %v139, 4294901760
    %2611 = vmatpush.msra.mxu0 %v2610
    %v2612 = vand.u32 %v135, 4294901760
    %2613 = vmatpush.msra.mxu0 %v2612
    %v2614 = vand.u32 %v131, 4294901760
    %2615 = vmatpush.msra.mxu0 %v2614
    %v2616 = vand.u32 %v194, 4294901760
    %v2617 = vsub.f32 %v194, %v2616
    %v2618 = vand.u32 %v2617, 4294901760
    %v2619 = vsub.f32 %v2617, %v2618
    %v2620 = vand.u32 %v2619, 4294901760
    %2621 = vmatmul.f32.gmra.mxu0 %v2620
    %v2622 = vpop.f32.mrf.mxu0
    %v2623 = vadd.f32 %v2582, %v2622
    %2624 = vdwg.mxu0
    %v2625 = vand.u32 %v191, 4294901760
    %v2626 = vsub.f32 %v191, %v2625
    %v2627 = vand.u32 %v2626, 4294901760
    %v2628 = vsub.f32 %v2626, %v2627
    %v2629 = vand.u32 %v2628, 4294901760
    %2630 = vmatpush.msra.mxu0 %v2629
    %v2631 = vand.u32 %v187, 4294901760
    %v2632 = vsub.f32 %v187, %v2631
    %v2633 = vand.u32 %v2632, 4294901760
    %v2634 = vsub.f32 %v2632, %v2633
    %v2635 = vand.u32 %v2634, 4294901760
    %2636 = vmatpush.msra.mxu0 %v2635
    %v2637 = vand.u32 %v183, 4294901760
    %v2638 = vsub.f32 %v183, %v2637
    %v2639 = vand.u32 %v2638, 4294901760
    %v2640 = vsub.f32 %v2638, %v2639
    %v2641 = vand.u32 %v2640, 4294901760
    %2642 = vmatpush.msra.mxu0 %v2641
    %v2643 = vand.u32 %v179, 4294901760
    %v2644 = vsub.f32 %v179, %v2643
    %v2645 = vand.u32 %v2644, 4294901760
    %v2646 = vsub.f32 %v2644, %v2645
    %v2647 = vand.u32 %v2646, 4294901760
    %2648 = vmatpush.msra.mxu0 %v2647
    %v2649 = vand.u32 %v175, 4294901760
    %v2650 = vsub.f32 %v175, %v2649
    %v2651 = vand.u32 %v2650, 4294901760
    %v2652 = vsub.f32 %v2650, %v2651
    %v2653 = vand.u32 %v2652, 4294901760
    %2654 = vmatpush.msra.mxu0 %v2653
    %v2655 = vand.u32 %v171, 4294901760
    %v2656 = vsub.f32 %v171, %v2655
    %v2657 = vand.u32 %v2656, 4294901760
    %v2658 = vsub.f32 %v2656, %v2657
    %v2659 = vand.u32 %v2658, 4294901760
    %2660 = vmatpush.msra.mxu0 %v2659
    %v2661 = vand.u32 %v167, 4294901760
    %v2662 = vsub.f32 %v167, %v2661
    %v2663 = vand.u32 %v2662, 4294901760
    %v2664 = vsub.f32 %v2662, %v2663
    %v2665 = vand.u32 %v2664, 4294901760
    %2666 = vmatpush.msra.mxu0 %v2665
    %v2667 = vand.u32 %v163, 4294901760
    %v2668 = vsub.f32 %v163, %v2667
    %v2669 = vand.u32 %v2668, 4294901760
    %v2670 = vsub.f32 %v2668, %v2669
    %v2671 = vand.u32 %v2670, 4294901760
    %2672 = vmatpush.msra.mxu0 %v2671
    %v2673 = vand.u32 %v159, 4294901760
    %v2674 = vsub.f32 %v159, %v2673
    %v2675 = vand.u32 %v2674, 4294901760
    %v2676 = vsub.f32 %v2674, %v2675
    %v2677 = vand.u32 %v2676, 4294901760
    %2678 = vmatpush.msra.mxu0 %v2677
    %v2679 = vand.u32 %v155, 4294901760
    %v2680 = vsub.f32 %v155, %v2679
    %v2681 = vand.u32 %v2680, 4294901760
    %v2682 = vsub.f32 %v2680, %v2681
    %v2683 = vand.u32 %v2682, 4294901760
    %2684 = vmatpush.msra.mxu0 %v2683
    %v2685 = vand.u32 %v151, 4294901760
    %v2686 = vsub.f32 %v151, %v2685
    %v2687 = vand.u32 %v2686, 4294901760
    %v2688 = vsub.f32 %v2686, %v2687
    %v2689 = vand.u32 %v2688, 4294901760
    %2690 = vmatpush.msra.mxu0 %v2689
    %v2691 = vand.u32 %v147, 4294901760
    %v2692 = vsub.f32 %v147, %v2691
    %v2693 = vand.u32 %v2692, 4294901760
    %v2694 = vsub.f32 %v2692, %v2693
    %v2695 = vand.u32 %v2694, 4294901760
    %2696 = vmatpush.msra.mxu0 %v2695
    %v2697 = vand.u32 %v143, 4294901760
    %v2698 = vsub.f32 %v143, %v2697
    %v2699 = vand.u32 %v2698, 4294901760
    %v2700 = vsub.f32 %v2698, %v2699
    %v2701 = vand.u32 %v2700, 4294901760
    %2702 = vmatpush.msra.mxu0 %v2701
    %v2703 = vand.u32 %v139, 4294901760
    %v2704 = vsub.f32 %v139, %v2703
    %v2705 = vand.u32 %v2704, 4294901760
    %v2706 = vsub.f32 %v2704, %v2705
    %v2707 = vand.u32 %v2706, 4294901760
    %2708 = vmatpush.msra.mxu0 %v2707
    %v2709 = vand.u32 %v135, 4294901760
    %v2710 = vsub.f32 %v135, %v2709
    %v2711 = vand.u32 %v2710, 4294901760
    %v2712 = vsub.f32 %v2710, %v2711
    %v2713 = vand.u32 %v2712, 4294901760
    %2714 = vmatpush.msra.mxu0 %v2713
    %v2715 = vand.u32 %v131, 4294901760
    %v2716 = vsub.f32 %v131, %v2715
    %v2717 = vand.u32 %v2716, 4294901760
    %v2718 = vsub.f32 %v2716, %v2717
    %v2719 = vand.u32 %v2718, 4294901760
    %2720 = vmatpush.msra.mxu0 %v2719
    %v2721 = vand.u32 %v194, 4294901760
    %2722 = vmatmul.f32.gmra.mxu0 %v2721
    %v2723 = vpop.f32.mrf.mxu0
    %v2724 = vadd.f32 %v2623, %v2723
    %2725 = vdwg.mxu0
    %v2726 = vand.u32 %v191, 4294901760
    %v2727 = vsub.f32 %v191, %v2726
    %2728 = vmatpush.msra.mxu0 %v2727
    %v2729 = vand.u32 %v187, 4294901760
    %v2730 = vsub.f32 %v187, %v2729
    %2731 = vmatpush.msra.mxu0 %v2730
    %v2732 = vand.u32 %v183, 4294901760
    %v2733 = vsub.f32 %v183, %v2732
    %2734 = vmatpush.msra.mxu0 %v2733
    %v2735 = vand.u32 %v179, 4294901760
    %v2736 = vsub.f32 %v179, %v2735
    %2737 = vmatpush.msra.mxu0 %v2736
    %v2738 = vand.u32 %v175, 4294901760
    %v2739 = vsub.f32 %v175, %v2738
    %2740 = vmatpush.msra.mxu0 %v2739
    %v2741 = vand.u32 %v171, 4294901760
    %v2742 = vsub.f32 %v171, %v2741
    %2743 = vmatpush.msra.mxu0 %v2742
    %v2744 = vand.u32 %v167, 4294901760
    %v2745 = vsub.f32 %v167, %v2744
    %2746 = vmatpush.msra.mxu0 %v2745
    %v2747 = vand.u32 %v163, 4294901760
    %v2748 = vsub.f32 %v163, %v2747
    %2749 = vmatpush.msra.mxu0 %v2748
    %v2750 = vand.u32 %v159, 4294901760
    %v2751 = vsub.f32 %v159, %v2750
    %2752 = vmatpush.msra.mxu0 %v2751
    %v2753 = vand.u32 %v155, 4294901760
    %v2754 = vsub.f32 %v155, %v2753
    %2755 = vmatpush.msra.mxu0 %v2754
    %v2756 = vand.u32 %v151, 4294901760
    %v2757 = vsub.f32 %v151, %v2756
    %2758 = vmatpush.msra.mxu0 %v2757
    %v2759 = vand.u32 %v147, 4294901760
    %v2760 = vsub.f32 %v147, %v2759
    %2761 = vmatpush.msra.mxu0 %v2760
    %v2762 = vand.u32 %v143, 4294901760
    %v2763 = vsub.f32 %v143, %v2762
    %2764 = vmatpush.msra.mxu0 %v2763
    %v2765 = vand.u32 %v139, 4294901760
    %v2766 = vsub.f32 %v139, %v2765
    %2767 = vmatpush.msra.mxu0 %v2766
    %v2768 = vand.u32 %v135, 4294901760
    %v2769 = vsub.f32 %v135, %v2768
    %2770 = vmatpush.msra.mxu0 %v2769
    %v2771 = vand.u32 %v131, 4294901760
    %v2772 = vsub.f32 %v131, %v2771
    %2773 = vmatpush.msra.mxu0 %v2772
    %v2774 = vand.u32 %v194, 4294901760
    %v2775 = vsub.f32 %v194, %v2774
    %2776 = vmatmul.f32.gmra.mxu0 %v2775
    %v2777 = vpop.f32.mrf.mxu0
    %v2778 = vadd.f32 %v2724, %v2777
    %2779 = vdwg.mxu0
    %v2780 = vand.u32 %v191, 4294901760
    %2781 = vmatpush.msra.mxu0 %v2780
    %v2782 = vand.u32 %v187, 4294901760
    %2783 = vmatpush.msra.mxu0 %v2782
    %v2784 = vand.u32 %v183, 4294901760
    %2785 = vmatpush.msra.mxu0 %v2784
    %v2786 = vand.u32 %v179, 4294901760
    %2787 = vmatpush.msra.mxu0 %v2786
    %v2788 = vand.u32 %v175, 4294901760
    %2789 = vmatpush.msra.mxu0 %v2788
    %v2790 = vand.u32 %v171, 4294901760
    %2791 = vmatpush.msra.mxu0 %v2790
    %v2792 = vand.u32 %v167, 4294901760
    %2793 = vmatpush.msra.mxu0 %v2792
    %v2794 = vand.u32 %v163, 4294901760
    %2795 = vmatpush.msra.mxu0 %v2794
    %v2796 = vand.u32 %v159, 4294901760
    %2797 = vmatpush.msra.mxu0 %v2796
    %v2798 = vand.u32 %v155, 4294901760
    %2799 = vmatpush.msra.mxu0 %v2798
    %v2800 = vand.u32 %v151, 4294901760
    %2801 = vmatpush.msra.mxu0 %v2800
    %v2802 = vand.u32 %v147, 4294901760
    %2803 = vmatpush.msra.mxu0 %v2802
    %v2804 = vand.u32 %v143, 4294901760
    %2805 = vmatpush.msra.mxu0 %v2804
    %v2806 = vand.u32 %v139, 4294901760
    %2807 = vmatpush.msra.mxu0 %v2806
    %v2808 = vand.u32 %v135, 4294901760
    %2809 = vmatpush.msra.mxu0 %v2808
    %v2810 = vand.u32 %v131, 4294901760
    %2811 = vmatpush.msra.mxu0 %v2810
    %v2812 = vand.u32 %v194, 4294901760
    %v2813 = vsub.f32 %v194, %v2812
    %v2814 = vand.u32 %v2813, 4294901760
    %2815 = vmatmul.f32.gmra.mxu0 %v2814
    %v2816 = vpop.f32.mrf.mxu0
    %v2817 = vadd.f32 %v2778, %v2816
    %2818 = vdwg.mxu0
    %v2819 = vand.u32 %v191, 4294901760
    %v2820 = vsub.f32 %v191, %v2819
    %v2821 = vand.u32 %v2820, 4294901760
    %2822 = vmatpush.msra.mxu0 %v2821
    %v2823 = vand.u32 %v187, 4294901760
    %v2824 = vsub.f32 %v187, %v2823
    %v2825 = vand.u32 %v2824, 4294901760
    %2826 = vmatpush.msra.mxu0 %v2825
    %v2827 = vand.u32 %v183, 4294901760
    %v2828 = vsub.f32 %v183, %v2827
    %v2829 = vand.u32 %v2828, 4294901760
    %2830 = vmatpush.msra.mxu0 %v2829
    %v2831 = vand.u32 %v179, 4294901760
    %v2832 = vsub.f32 %v179, %v2831
    %v2833 = vand.u32 %v2832, 4294901760
    %2834 = vmatpush.msra.mxu0 %v2833
    %v2835 = vand.u32 %v175, 4294901760
    %v2836 = vsub.f32 %v175, %v2835
    %v2837 = vand.u32 %v2836, 4294901760
    %2838 = vmatpush.msra.mxu0 %v2837
    %v2839 = vand.u32 %v171, 4294901760
    %v2840 = vsub.f32 %v171, %v2839
    %v2841 = vand.u32 %v2840, 4294901760
    %2842 = vmatpush.msra.mxu0 %v2841
    %v2843 = vand.u32 %v167, 4294901760
    %v2844 = vsub.f32 %v167, %v2843
    %v2845 = vand.u32 %v2844, 4294901760
    %2846 = vmatpush.msra.mxu0 %v2845
    %v2847 = vand.u32 %v163, 4294901760
    %v2848 = vsub.f32 %v163, %v2847
    %v2849 = vand.u32 %v2848, 4294901760
    %2850 = vmatpush.msra.mxu0 %v2849
    %v2851 = vand.u32 %v159, 4294901760
    %v2852 = vsub.f32 %v159, %v2851
    %v2853 = vand.u32 %v2852, 4294901760
    %2854 = vmatpush.msra.mxu0 %v2853
    %v2855 = vand.u32 %v155, 4294901760
    %v2856 = vsub.f32 %v155, %v2855
    %v2857 = vand.u32 %v2856, 4294901760
    %2858 = vmatpush.msra.mxu0 %v2857
    %v2859 = vand.u32 %v151, 4294901760
    %v2860 = vsub.f32 %v151, %v2859
    %v2861 = vand.u32 %v2860, 4294901760
    %2862 = vmatpush.msra.mxu0 %v2861
    %v2863 = vand.u32 %v147, 4294901760
    %v2864 = vsub.f32 %v147, %v2863
    %v2865 = vand.u32 %v2864, 4294901760
    %2866 = vmatpush.msra.mxu0 %v2865
    %v2867 = vand.u32 %v143, 4294901760
    %v2868 = vsub.f32 %v143, %v2867
    %v2869 = vand.u32 %v2868, 4294901760
    %2870 = vmatpush.msra.mxu0 %v2869
    %v2871 = vand.u32 %v139, 4294901760
    %v2872 = vsub.f32 %v139, %v2871
    %v2873 = vand.u32 %v2872, 4294901760
    %2874 = vmatpush.msra.mxu0 %v2873
    %v2875 = vand.u32 %v135, 4294901760
    %v2876 = vsub.f32 %v135, %v2875
    %v2877 = vand.u32 %v2876, 4294901760
    %2878 = vmatpush.msra.mxu0 %v2877
    %v2879 = vand.u32 %v131, 4294901760
    %v2880 = vsub.f32 %v131, %v2879
    %v2881 = vand.u32 %v2880, 4294901760
    %2882 = vmatpush.msra.mxu0 %v2881
    %v2883 = vand.u32 %v194, 4294901760
    %2884 = vmatmul.f32.gmra.mxu0 %v2883
    %v2885 = vpop.f32.mrf.mxu0
    %v2886 = vadd.f32 %v2817, %v2885
    %2887 = vdwg.mxu0
    %v2888 = vand.u32 %v191, 4294901760
    %2889 = vmatpush.msra.mxu0 %v2888
    %v2890 = vand.u32 %v187, 4294901760
    %2891 = vmatpush.msra.mxu0 %v2890
    %v2892 = vand.u32 %v183, 4294901760
    %2893 = vmatpush.msra.mxu0 %v2892
    %v2894 = vand.u32 %v179, 4294901760
    %2895 = vmatpush.msra.mxu0 %v2894
    %v2896 = vand.u32 %v175, 4294901760
    %2897 = vmatpush.msra.mxu0 %v2896
    %v2898 = vand.u32 %v171, 4294901760
    %2899 = vmatpush.msra.mxu0 %v2898
    %v2900 = vand.u32 %v167, 4294901760
    %2901 = vmatpush.msra.mxu0 %v2900
    %v2902 = vand.u32 %v163, 4294901760
    %2903 = vmatpush.msra.mxu0 %v2902
    %v2904 = vand.u32 %v159, 4294901760
    %2905 = vmatpush.msra.mxu0 %v2904
    %v2906 = vand.u32 %v155, 4294901760
    %2907 = vmatpush.msra.mxu0 %v2906
    %v2908 = vand.u32 %v151, 4294901760
    %2909 = vmatpush.msra.mxu0 %v2908
    %v2910 = vand.u32 %v147, 4294901760
    %2911 = vmatpush.msra.mxu0 %v2910
    %v2912 = vand.u32 %v143, 4294901760
    %2913 = vmatpush.msra.mxu0 %v2912
    %v2914 = vand.u32 %v139, 4294901760
    %2915 = vmatpush.msra.mxu0 %v2914
    %v2916 = vand.u32 %v135, 4294901760
    %2917 = vmatpush.msra.mxu0 %v2916
    %v2918 = vand.u32 %v131, 4294901760
    %2919 = vmatpush.msra.mxu0 %v2918
    %v2920 = vand.u32 %v194, 4294901760
    %2921 = vmatmul.f32.gmra.mxu0 %v2920
    %v2922 = vpop.f32.mrf.mxu0
    %v2923 = vadd.f32 %v2886, %v2922
    %2924 = vdwg.mxu0
    %v2925 = vld [vmem:[#allocation7] sm:$0xff]
    %v2926 = vld [vmem:[#allocation7 + $0x8] sm:$0xff]
    %v2927 = vld [vmem:[#allocation7 + $0x40] sm:$0xff]
    %v2928 = vld [vmem:[#allocation7 + $0x48] sm:$0xff]
    %v2929 = vld [vmem:[#allocation7 + $0x80] sm:$0xff]
    %v2930 = vld [vmem:[#allocation7 + $0x88] sm:$0xff]
    %v2931 = vld [vmem:[#allocation7 + $0x10] sm:$0xff]
    %v2932 = vld [vmem:[#allocation7 + $0x18] sm:$0xff]
    %v2933 = vld [vmem:[#allocation7 + $0x50] sm:$0xff]
    %v2934 = vld [vmem:[#allocation7 + $0x58] sm:$0xff]
    %v2935 = vld [vmem:[#allocation7 + $0x90] sm:$0xff]
    %v2936 = vld [vmem:[#allocation7 + $0x98] sm:$0xff]
    %v2937 = vld [vmem:[#allocation7 + $0x20] sm:$0xff]
    %v2938 = vld [vmem:[#allocation7 + $0x28] sm:$0xff]
    %v2939 = vld [vmem:[#allocation7 + $0x60] sm:$0xff]
    %v2940 = vld [vmem:[#allocation7 + $0x68] sm:$0xff]
    %v2941 = vld [vmem:[#allocation7 + $0xa0] sm:$0xff]
    %v2942 = vld [vmem:[#allocation7 + $0xa8] sm:$0xff]
    %v2943 = vld [vmem:[#allocation7 + $0x30] sm:$0xff]
    %v2944 = vld [vmem:[#allocation7 + $0x38] sm:$0xff]
    %v2945 = vld [vmem:[#allocation7 + $0x70] sm:$0xff]
    %v2946 = vld [vmem:[#allocation7 + $0x78] sm:$0xff]
    %v2947 = vld [vmem:[#allocation7 + $0xb0] sm:$0xff]
    %v2948 = vld [vmem:[#allocation7 + $0xb8] sm:$0xff]
    %v2949 = vperm.slane %v877, 0
    %v2950 = vperm.slane %v1559, 0
    %v2951 = vmul.f32 %v2949, %v2925
    %v2952 = vmul.f32 %v2950, %v2926
    %v2953 = vmul.f32 %v2949, %v2927
    %v2954 = vmul.f32 %v2950, %v2928
    %v2955 = vmul.f32 %v2949, %v2929
    %v2956 = vmul.f32 %v2950, %v2930
    %v2957 = vperm.slane %v2241, 0
    %v2958 = vperm.slane %v2923, 0
    %v2959 = vmul.f32 %v2957, %v2931
    %v2960 = vmul.f32 %v2958, %v2932
    %v2961 = vmul.f32 %v2957, %v2933
    %v2962 = vmul.f32 %v2958, %v2934
    %v2963 = vmul.f32 %v2957, %v2935
    %v2964 = vmul.f32 %v2958, %v2936
    %v2965 = vsub.f32 %v2951, %v2959
    %v2966 = vsub.f32 %v2952, %v2960
    %v2967 = vsub.f32 %v2953, %v2961
    %v2968 = vsub.f32 %v2954, %v2962
    %v2969 = vsub.f32 %v2955, %v2963
    %v2970 = vsub.f32 %v2956, %v2964
    %v2971 = vmul.f32 %v2949, %v2931
    %v2972 = vmul.f32 %v2950, %v2932
    %v2973 = vmul.f32 %v2949, %v2933
    %v2974 = vmul.f32 %v2950, %v2934
    %v2975 = vmul.f32 %v2949, %v2935
    %v2976 = vmul.f32 %v2950, %v2936
    %v2977 = vmul.f32 %v2957, %v2925
    %v2978 = vmul.f32 %v2958, %v2926
    %v2979 = vmul.f32 %v2957, %v2927
    %v2980 = vmul.f32 %v2958, %v2928
    %v2981 = vmul.f32 %v2957, %v2929
    %v2982 = vmul.f32 %v2958, %v2930
    %v2983 = vadd.f32 %v2971, %v2977
    %v2984 = vadd.f32 %v2972, %v2978
    %v2985 = vadd.f32 %v2973, %v2979
    %v2986 = vadd.f32 %v2974, %v2980
    %v2987 = vadd.f32 %v2975, %v2981
    %v2988 = vadd.f32 %v2976, %v2982
    %2989 = vst [vmem:[#allocation8] sm:$0xff] %v2965
    %2990 = vst [vmem:[#allocation8 + $0x8] sm:$0xff] %v2966
    %2991 = vst [vmem:[#allocation8 + $0x20] sm:$0xff] %v2967
    %2992 = vst [vmem:[#allocation8 + $0x28] sm:$0xff] %v2968
    %2993 = vst [vmem:[#allocation8 + $0x40] sm:$0xff] %v2969
    %2994 = vst [vmem:[#allocation8 + $0x48] sm:$0xff] %v2970
    %2995 = vst [vmem:[#allocation8 + $0x10] sm:$0xff] %v2983
    %2996 = vst [vmem:[#allocation8 + $0x18] sm:$0xff] %v2984
    %2997 = vst [vmem:[#allocation8 + $0x30] sm:$0xff] %v2985
    %2998 = vst [vmem:[#allocation8 + $0x38] sm:$0xff] %v2986
    %2999 = vst [vmem:[#allocation8 + $0x50] sm:$0xff] %v2987
    %3000 = vst [vmem:[#allocation8 + $0x58] sm:$0xff] %v2988
    %v3001 = vmul.f32 %v2937, %v2965
    %v3002 = vmul.f32 %v2938, %v2966
    %v3003 = vmul.f32 %v2939, %v2967
    %v3004 = vmul.f32 %v2940, %v2968
    %v3005 = vmul.f32 %v2941, %v2969
    %v3006 = vmul.f32 %v2942, %v2970
    %v3007 = vmul.f32 %v2943, %v2983
    %v3008 = vmul.f32 %v2944, %v2984
    %v3009 = vmul.f32 %v2945, %v2985
    %v3010 = vmul.f32 %v2946, %v2986
    %v3011 = vmul.f32 %v2947, %v2987
    %v3012 = vmul.f32 %v2948, %v2988
    %v3013 = vsub.f32 %v3001, %v3007
    %v3014 = vsub.f32 %v3002, %v3008
    %v3015 = vsub.f32 %v3003, %v3009
    %v3016 = vsub.f32 %v3004, %v3010
    %v3017 = vsub.f32 %v3005, %v3011
    %v3018 = vsub.f32 %v3006, %v3012
    %v3019 = vmul.f32 %v2937, %v2983
    %v3020 = vmul.f32 %v2938, %v2984
    %v3021 = vmul.f32 %v2939, %v2985
    %v3022 = vmul.f32 %v2940, %v2986
    %v3023 = vmul.f32 %v2941, %v2987
    %v3024 = vmul.f32 %v2942, %v2988
    %v3025 = vmul.f32 %v2943, %v2965
    %v3026 = vmul.f32 %v2944, %v2966
    %v3027 = vmul.f32 %v2945, %v2967
    %v3028 = vmul.f32 %v2946, %v2968
    %v3029 = vmul.f32 %v2947, %v2969
    %v3030 = vmul.f32 %v2948, %v2970
    %v3031 = vadd.f32 %v3019, %v3025
    %v3032 = vadd.f32 %v3020, %v3026
    %v3033 = vadd.f32 %v3021, %v3027
    %v3034 = vadd.f32 %v3022, %v3028
    %v3035 = vadd.f32 %v3023, %v3029
    %v3036 = vadd.f32 %v3024, %v3030
    %v3037 = vadd.f32 %v3013, %v3015
    %v3038 = vadd.f32 %v3037, %v3017
    %v3039 = vadd.f32 %v3014, %v3016
    %v3040 = vadd.f32 %v3039, %v3018
    %3041 = vst [vmem:[#allocation9] sm:$0xff] %v3038
    %3042 = vst [vmem:[#allocation9 + $0x8] sm:$0xff] %v3040
    %v3043 = vadd.f32 %v3031, %v3033
    %v3044 = vadd.f32 %v3043, %v3035
    %v3045 = vadd.f32 %v3032, %v3034
    %v3046 = vadd.f32 %v3045, %v3036
    %3047 = vst [vmem:[#allocation9 + $0x10] sm:$0xff] %v3044
    %3048 = vst [vmem:[#allocation9 + $0x18] sm:$0xff] %v3046
    // Predicated region
    $region26: #{tpu_custom_call.1} parent=1 // pred_check
      _
    $region27: #{tpu_custom_call.1} parent=1 // pred_check_branch
      %3050 = sbr.rel (0) target = $region29
    $region28: #{tpu_custom_call.1} parent=1 // pred_region
      %3052 = vsyncadd [#allocation4], 0
      %s3053 = sshll.u32 [#allocation8], 4
      %s3054 = int_to_ptr.vmem [resolvable:$true] %s3053
      %s3055 = sshll.u32 %s3, 4
      %s3056 = int_to_ptr.hbm [resolvable:$true] %s3055
      %3061 = dma.vmem_to_hbm [thread:$0]  %s3054, 1536, %s3056, [#allocation4], 512, 512, 32
    $region29: #{tpu_custom_call.1} parent=1 // pred_fallthru
      _
    // Predicated region
    $region30: #{tpu_custom_call.1} parent=1 // pred_check
      _
    $region31: #{tpu_custom_call.1} parent=1 // pred_check_branch
      %3063 = sbr.rel (0) target = $region33
    $region32: #{tpu_custom_call.1} parent=1 // pred_region
      %3065 = vsyncadd [#allocation10], 0
      %s3067 = sshll.u32 [#allocation9], 4
      %s3068 = int_to_ptr.vmem [resolvable:$true] %s3067
      %s3069 = sshll.u32 %s4, 4
      %s3070 = int_to_ptr.hbm [resolvable:$true] %s3069
      %3072 = dma.vmem_to_hbm [thread:$0]  %s3068, 512, %s3070, [#allocation10]
    $region33: #{tpu_custom_call.1} parent=1 // pred_fallthru
      _
    // Predicated region
    $region34: #{tpu_custom_call.1} parent=1 // pred_check
      _
    $region35: #{tpu_custom_call.1} parent=1 // pred_check_branch
      %3074 = sbr.rel (0) target = $region37
    $region36: #{tpu_custom_call.1} parent=1 // pred_region
      %3076 = dma.done [#allocation4], 1536
    $region37: #{tpu_custom_call.1} parent=1 // pred_fallthru
      _
    // Predicated region
    $region38: #{tpu_custom_call.1} parent=1 // pred_check
      _
    $region39: #{tpu_custom_call.1} parent=1 // pred_check_branch
      %3078 = sbr.rel (0) target = $region41
    $region40: #{tpu_custom_call.1} parent=1 // pred_region
      %3080 = dma.done [#allocation10], 512
    $region41: #{tpu_custom_call.1} parent=1 // pred_fallthru
      _
    %3081 = vsyncpa [#allocation3], 1
    %3082 = vsyncpa [#allocation6], 1
    %3083 = vsyncpa [#allocation4], 1
    %3084 = vsyncpa [#allocation10], 1

</llo_original>
